<compile_context>
chip_gen: v7x
topology: tpu7x:2x2x1
jax: 0.10.0
libtpu: 0.0.40
codegen_flags: <defaults>
</compile_context>

<pallas_src>
import jax
import jax.numpy as jnp
from jax.experimental import pallas as pl
from jax.experimental.pallas import tpu as pltpu


def _round_up(x, m):
    return (x + m - 1) // m * m


def gru_kernel(lens_ref, x_ref, wih_ref, whh_ref, b_in_ref, bhh_n_ref,
               wfc_ref, bfc_ref, out_ref, hid_ref, gi_ref):
    T, Bp, G3 = gi_ref.shape           # G3 = 3 * Hp (each gate padded to 128 lanes)
    Hp = G3 // 3

    # ---- Phase 1: input projection for ALL timesteps as one MXU matmul -----
    # b_in already folds b_ih (all gates) + b_hh (r,z gates); gate columns are
    # zero-padded to 128-lane boundaries so the later slices are whole vregs.
    gi = jnp.dot(x_ref[...], wih_ref[...], preferred_element_type=jnp.float32)
    gi_ref[...] = gi.reshape(T, Bp, G3) + b_in_ref[...]

    # ---- Phase 2: serial recurrence (only h @ W_hh left inside the loop) ----
    whh = whh_ref[...]                                      # (Hp, 3Hp) resident in vregs
    bhh_n_b = jnp.broadcast_to(bhh_n_ref[...], (Bp, Hp))    # hoisted (no per-step bcast)
    lens = lens_ref[...]                                    # (Bp, 1) int32 seq lengths

    def step(t, h_prev):
        gi_t = gi_ref[t]                                    # (Bp, 3Hp), leading-dim index
        gh = jnp.dot(h_prev, whh, preferred_element_type=jnp.float32)
        r = jax.nn.sigmoid(gi_t[:, :Hp] + gh[:, :Hp])
        z = jax.nn.sigmoid(gi_t[:, Hp:2 * Hp] + gh[:, Hp:2 * Hp])
        n = jnp.tanh(gi_t[:, 2 * Hp:] + r * (gh[:, 2 * Hp:] + bhh_n_b))
        h_new = n + z * (h_prev - n)                        # == (1-z)*n + z*h_prev
        # packed-sequence semantics: freeze h once t >= seq_len[b]
        return jnp.where(t < lens, h_new, h_prev)

    h0 = jnp.zeros((Bp, Hp), jnp.float32)
    # Static trip count + unroll -> the LLO can pipeline across iterations.
    # TODO(synk): at production T, unroll by 4 with a remainder instead.
    h_fin = jax.lax.fori_loop(0, T, step, h0, unroll=True)

    # ---- Phase 3: final Linear on the last hidden state ---------------------
    hid_ref[...] = h_fin
    out_ref[...] = (jnp.dot(h_fin, wfc_ref[...],
                            preferred_element_type=jnp.float32)
                    + bfc_ref[...])


def gru_forward(x, seq_lengths, params):
    """x: (B, T, D) float32 (batch_first, like the PyTorch module).
    Returns (output (B, O), hidden (num_layers=1, B, H))."""
    B, T, D = x.shape
    H = params["w_hh"].shape[0]
    O = params["w_fc"].shape[1]
    Bp = _round_up(B, 8)       # sublane pad
    Hp = _round_up(H, 128)     # lane pad: gate boundaries land on vreg edges
    Op = _round_up(O, 128)     # lane-dense output -> unmasked stores

    def pad_gates(w, rows_to=None):
        # (rows, 3H) -> (rows_to, 3Hp): each gate's columns zero-padded to Hp.
        rows = w.shape[0]
        rows_to = rows if rows_to is None else rows_to
        parts = [jnp.pad(w[:, g * H:(g + 1) * H],
                         ((0, rows_to - rows), (0, Hp - H))) for g in range(3)]
        return jnp.concatenate(parts, axis=1)

    # Hoisted bias algebra:
    #   r,z: gi + gh + b_ih + b_hh   -> fold both biases into the input proj.
    #   n:   gi + b_ih + r*(gh+b_hh) -> only b_ih folds; keep b_hh_n separate.
    b_in = params["b_ih"].at[:, :2 * H].add(params["b_hh"][:, :2 * H])

    wih_p = pad_gates(params["w_ih"])                       # (D, 3Hp)
    whh_p = pad_gates(params["w_hh"], rows_to=Hp)           # (Hp, 3Hp)
    b_in_p = pad_gates(b_in)                                # (1, 3Hp)
    bhh_n_p = jnp.pad(params["b_hh"][:, 2 * H:], ((0, 0), (0, Hp - H)))   # (1, Hp)
    wfc_p = jnp.pad(params["w_fc"], ((0, Hp - H), (0, Op - O)))           # (Hp, Op)
    bfc_p = jnp.pad(params["b_fc"], ((0, 0), (0, Op - O)))                # (1, Op)

    # Time-major, batch padded to a full sublane group, flattened so phase-1 is
    # one (T*Bp, D) @ (D, 3Hp) matmul and gi is stored (T, Bp, 3Hp).
    # TODO(synk): at production T keep x in HBM (memory_space=pl.ANY) and
    # time-chunk the input projection with a double-buffered DMA pipeline
    # instead of this wrapper-side transpose + whole-sequence VMEM residency.
    x_tm = jnp.transpose(x, (1, 0, 2))                      # (T, B, D)
    x_tm = jnp.pad(x_tm, ((0, 0), (0, Bp - B), (0, 0)))     # (T, Bp, D)
    x_flat = x_tm.reshape(T * Bp, D)

    # padded batch rows get length 0 -> their h stays at the zero init.
    lens = jnp.pad(seq_lengths.astype(jnp.int32), (0, Bp - B)).reshape(Bp, 1)

    out, hid = pl.pallas_call(
        gru_kernel,
        out_shape=(jax.ShapeDtypeStruct((Bp, Op), jnp.float32),
                   jax.ShapeDtypeStruct((Bp, Hp), jnp.float32)),
        in_specs=[pl.BlockSpec(memory_space=pltpu.MemorySpace.VMEM)] * 8,
        out_specs=(pl.BlockSpec(memory_space=pltpu.MemorySpace.VMEM),
                   pl.BlockSpec(memory_space=pltpu.MemorySpace.VMEM)),
        scratch_shapes=[pltpu.VMEM((T, Bp, 3 * Hp), jnp.float32)],   # gi, all t
    )(lens, x_flat, wih_p, whh_p, b_in_p, bhh_n_p, wfc_p, bfc_p)

    return out[:B, :O], hid[:B, :H].reshape(1, B, H)


def gru_reference(x, seq_lengths, params):
    """Pure-JAX reference reproducing packed-sequence GRU + Linear."""
    B, T, D = x.shape
    H = params["w_hh"].shape[0]
    h = jnp.zeros((B, H), jnp.float32)
    lens = seq_lengths.astype(jnp.int32).reshape(B, 1)
    for t in range(T):
        x_t = x[:, t, :]
        gi = x_t @ params["w_ih"] + params["b_ih"]
        gh = h @ params["w_hh"] + params["b_hh"]
        r = jax.nn.sigmoid(gi[:, :H] + gh[:, :H])
        z = jax.nn.sigmoid(gi[:, H:2 * H] + gh[:, H:2 * H])
        n = jnp.tanh(gi[:, 2 * H:] + r * gh[:, 2 * H:])
        h_new = (1.0 - z) * n + z * h
        h = jnp.where(t < lens, h_new, h)
    out = h @ params["w_fc"] + params["b_fc"]
    return out, h.reshape(1, B, H)


def init_params(key, input_dim, hidden_dim, output_dim):
    """Deterministic init, PyTorch-style uniform(-1/sqrt(H), 1/sqrt(H))."""
    ks = jax.random.split(key, 8)
    s = 1.0 / jnp.sqrt(hidden_dim)
    u = lambda k, shape: jax.random.uniform(k, shape, jnp.float32, -s, s)
    return {
        # transposed relative to PyTorch (which stores (3H, in)); gate order [r,z,n]
        "w_ih": u(ks[0], (input_dim, 3 * hidden_dim)),
        "w_hh": u(ks[1], (hidden_dim, 3 * hidden_dim)),
        "b_ih": u(ks[2], (1, 3 * hidden_dim)),
        "b_hh": u(ks[3], (1, 3 * hidden_dim)),
        "w_fc": u(ks[4], (hidden_dim, output_dim)),
        "b_fc": u(ks[5], (1, output_dim)),
    }


if __name__ == "__main__":
    # small shapes: batch=2, seq=8, input_dim=4, hidden=32, output_dim=8
    B, T, D, H, O = 2, 8, 4, 32, 8
    key = jax.random.PRNGKey(0)
    kx, kp = jax.random.split(key)

    x = jax.random.normal(kx, (B, T, D), jnp.float32)
    seq_lengths = jnp.array([8, 5], jnp.int32)        # variable lengths (packed)
    params = init_params(kp, D, H, O)

    out, hidden = gru_forward(x, seq_lengths, params)
    out = jax.block_until_ready(out)
    hidden = jax.block_until_ready(hidden)

    out_ref, hidden_ref = gru_reference(x, seq_lengths, params)
    assert out.shape == (B, O) and hidden.shape == (1, B, H)
    assert jnp.allclose(out, out_ref, atol=1e-5), "output mismatch vs reference"
    assert jnp.allclose(hidden, hidden_ref, atol=1e-5), "hidden mismatch vs reference"

    print("KERNEL_OK")
</pallas_src>

<mosaic_0001>
module attributes {stable_mosaic.version = 11 : i64} {
  func.func @gru_kernel(%arg0: memref<8x1xi32, #tpu.memory_space<vmem>>, %arg1: memref<64x4xf32, #tpu.memory_space<vmem>>, %arg2: memref<4x384xf32, #tpu.memory_space<vmem>>, %arg3: memref<128x384xf32, #tpu.memory_space<vmem>>, %arg4: memref<1x384xf32, #tpu.memory_space<vmem>>, %arg5: memref<1x128xf32, #tpu.memory_space<vmem>>, %arg6: memref<128x128xf32, #tpu.memory_space<vmem>>, %arg7: memref<1x128xf32, #tpu.memory_space<vmem>>, %arg8: memref<8x128xf32, #tpu.memory_space<vmem>>, %arg9: memref<8x128xf32, #tpu.memory_space<vmem>>, %arg10: memref<8x8x384xf32, #tpu.memory_space<vmem>>) attributes {dimension_semantics = [], scalar_prefetch = 0 : i64, scratch_operands = 1 : i64, tpu.core_type = #tpu.core_type<tc>} {
    %c0 = arith.constant 0 : index
    %c0_0 = arith.constant 0 : index
    %0 = vector.load %arg1[%c0, %c0_0] : memref<64x4xf32, #tpu.memory_space<vmem>>, vector<64x4xf32>
    %c0_1 = arith.constant 0 : index
    %c0_2 = arith.constant 0 : index
    %1 = vector.load %arg2[%c0_1, %c0_2] : memref<4x384xf32, #tpu.memory_space<vmem>>, vector<4x384xf32>
    %cst = arith.constant dense<0.000000e+00> : vector<64x384xf32>
    %2 = tpu.matmul %0, %1, %cst {dimension_numbers = #tpu.dot_dimension_numbers<[1], [0], [0], [1], [0, 0, 1, 1], [], []>} : vector<64x4xf32>, vector<4x384xf32>, vector<64x384xf32> -> vector<64x384xf32>
    %3 = vector.shape_cast %2 : vector<64x384xf32> to vector<8x8x384xf32>
    %c0_3 = arith.constant 0 : index
    %c0_4 = arith.constant 0 : index
    %4 = vector.load %arg4[%c0_3, %c0_4] : memref<1x384xf32, #tpu.memory_space<vmem>>, vector<1x384xf32>
    %5 = vector.shape_cast %4 : vector<1x384xf32> to vector<1x1x384xf32>
    %6 = vector.broadcast %5 : vector<1x1x384xf32> to vector<8x8x384xf32>
    %7 = arith.addf %3, %6 : vector<8x8x384xf32>
    %c0_5 = arith.constant 0 : index
    %c0_6 = arith.constant 0 : index
    %c0_7 = arith.constant 0 : index
    %8 = vector.load %arg10[%c0_5, %c0_6, %c0_7] : memref<8x8x384xf32, #tpu.memory_space<vmem>>, vector<8x8x384xf32>
    tpu.vector_store %arg10[%c0_5, %c0_6, %c0_7], %7 {strides = array<i32>} : memref<8x8x384xf32, #tpu.memory_space<vmem>>, vector<8x8x384xf32>,
    %c0_8 = arith.constant 0 : index
    %c0_9 = arith.constant 0 : index
    %9 = vector.load %arg3[%c0_8, %c0_9] : memref<128x384xf32, #tpu.memory_space<vmem>>, vector<128x384xf32>
    %c0_10 = arith.constant 0 : index
    %c0_11 = arith.constant 0 : index
    %10 = vector.load %arg5[%c0_10, %c0_11] : memref<1x128xf32, #tpu.memory_space<vmem>>, vector<1x128xf32>
    %11 = vector.shape_cast %10 : vector<1x128xf32> to vector<1x128xf32>
    %12 = vector.broadcast %11 : vector<1x128xf32> to vector<8x128xf32>
    %c0_12 = arith.constant 0 : index
    %c0_13 = arith.constant 0 : index
    %13 = vector.load %arg0[%c0_12, %c0_13] : memref<8x1xi32, #tpu.memory_space<vmem>>, vector<8x1xi32>
    %cst_14 = arith.constant 0.000000e+00 : f32
    %14 = vector.broadcast %cst_14 : f32 to vector<8x128xf32>
    %c0_i32 = arith.constant 0 : i32
    %15 = arith.index_cast %c0_i32 : i32 to index
    %c0_15 = arith.constant 0 : index
    %c0_16 = arith.constant 0 : index
    %16 = vector.load %arg10[%15, %c0_15, %c0_16] : memref<8x8x384xf32, #tpu.memory_space<vmem>>, vector<1x8x384xf32>
    %17 = vector.shape_cast %16 : vector<1x8x384xf32> to vector<8x384xf32>
    %cst_17 = arith.constant dense<0.000000e+00> : vector<8x384xf32>
    %18 = tpu.matmul %14, %9, %cst_17 {dimension_numbers = #tpu.dot_dimension_numbers<[1], [0], [0], [1], [0, 0, 1, 1], [], []>} : vector<8x128xf32>, vector<128x384xf32>, vector<8x384xf32> -> vector<8x384xf32>
    %19 = vector.extract_strided_slice %17 {offsets = [0, 0], sizes = [8, 128], strides = [1, 1]} : vector<8x384xf32> to vector<8x128xf32>
    %20 = vector.extract_strided_slice %18 {offsets = [0, 0], sizes = [8, 128], strides = [1, 1]} : vector<8x384xf32> to vector<8x128xf32>
    %21 = arith.addf %19, %20 : vector<8x128xf32>
    %22 = arith.negf %21 : vector<8x128xf32>
    %23 = math.exp %22 : vector<8x128xf32>
    %cst_18 = arith.constant 1.000000e+00 : f32
    %24 = vector.broadcast %cst_18 : f32 to vector<8x128xf32>
    %25 = arith.addf %24, %23 : vector<8x128xf32>
    %26 = arith.divf %24, %25 : vector<8x128xf32>
    %27 = vector.extract_strided_slice %17 {offsets = [0, 128], sizes = [8, 128], strides = [1, 1]} : vector<8x384xf32> to vector<8x128xf32>
    %28 = vector.extract_strided_slice %18 {offsets = [0, 128], sizes = [8, 128], strides = [1, 1]} : vector<8x384xf32> to vector<8x128xf32>
    %29 = arith.addf %27, %28 : vector<8x128xf32>
    %30 = arith.negf %29 : vector<8x128xf32>
    %31 = math.exp %30 : vector<8x128xf32>
    %cst_19 = arith.constant 1.000000e+00 : f32
    %32 = vector.broadcast %cst_19 : f32 to vector<8x128xf32>
    %33 = arith.addf %32, %31 : vector<8x128xf32>
    %34 = arith.divf %32, %33 : vector<8x128xf32>
    %35 = vector.extract_strided_slice %17 {offsets = [0, 256], sizes = [8, 128], strides = [1, 1]} : vector<8x384xf32> to vector<8x128xf32>
    %36 = vector.extract_strided_slice %18 {offsets = [0, 256], sizes = [8, 128], strides = [1, 1]} : vector<8x384xf32> to vector<8x128xf32>
    %37 = arith.addf %36, %12 : vector<8x128xf32>
    %38 = arith.mulf %26, %37 : vector<8x128xf32>
    %39 = arith.addf %35, %38 : vector<8x128xf32>
    %40 = math.tanh %39 : vector<8x128xf32>
    %41 = arith.subf %14, %40 : vector<8x128xf32>
    %42 = arith.mulf %34, %41 : vector<8x128xf32>
    %43 = arith.addf %40, %42 : vector<8x128xf32>
    %44 = vector.broadcast %c0_i32 : i32 to vector<8x1xi32>
    %45 = arith.cmpi slt, %44, %13 : vector<8x1xi32>
    %46 = vector.shape_cast %45 : vector<8x1xi1> to vector<8x1xi1>
    %47 = vector.broadcast %46 : vector<8x1xi1> to vector<8x128xi1>
    %48 = arith.select %47, %43, %14 : vector<8x128xi1>, vector<8x128xf32>
    %c1_i32 = arith.constant 1 : i32
    %49 = arith.index_cast %c1_i32 : i32 to index
    %c0_20 = arith.constant 0 : index
    %c0_21 = arith.constant 0 : index
    %50 = vector.load %arg10[%49, %c0_20, %c0_21] : memref<8x8x384xf32, #tpu.memory_space<vmem>>, vector<1x8x384xf32>
    %51 = vector.shape_cast %50 : vector<1x8x384xf32> to vector<8x384xf32>
    %cst_22 = arith.constant dense<0.000000e+00> : vector<8x384xf32>
    %52 = tpu.matmul %48, %9, %cst_22 {dimension_numbers = #tpu.dot_dimension_numbers<[1], [0], [0], [1], [0, 0, 1, 1], [], []>} : vector<8x128xf32>, vector<128x384xf32>, vector<8x384xf32> -> vector<8x384xf32>
    %53 = vector.extract_strided_slice %51 {offsets = [0, 0], sizes = [8, 128], strides = [1, 1]} : vector<8x384xf32> to vector<8x128xf32>
    %54 = vector.extract_strided_slice %52 {offsets = [0, 0], sizes = [8, 128], strides = [1, 1]} : vector<8x384xf32> to vector<8x128xf32>
    %55 = arith.addf %53, %54 : vector<8x128xf32>
    %56 = arith.negf %55 : vector<8x128xf32>
    %57 = math.exp %56 : vector<8x128xf32>
    %cst_23 = arith.constant 1.000000e+00 : f32
    %58 = vector.broadcast %cst_23 : f32 to vector<8x128xf32>
    %59 = arith.addf %58, %57 : vector<8x128xf32>
    %60 = arith.divf %58, %59 : vector<8x128xf32>
    %61 = vector.extract_strided_slice %51 {offsets = [0, 128], sizes = [8, 128], strides = [1, 1]} : vector<8x384xf32> to vector<8x128xf32>
    %62 = vector.extract_strided_slice %52 {offsets = [0, 128], sizes = [8, 128], strides = [1, 1]} : vector<8x384xf32> to vector<8x128xf32>
    %63 = arith.addf %61, %62 : vector<8x128xf32>
    %64 = arith.negf %63 : vector<8x128xf32>
    %65 = math.exp %64 : vector<8x128xf32>
    %cst_24 = arith.constant 1.000000e+00 : f32
    %66 = vector.broadcast %cst_24 : f32 to vector<8x128xf32>
    %67 = arith.addf %66, %65 : vector<8x128xf32>
    %68 = arith.divf %66, %67 : vector<8x128xf32>
    %69 = vector.extract_strided_slice %51 {offsets = [0, 256], sizes = [8, 128], strides = [1, 1]} : vector<8x384xf32> to vector<8x128xf32>
    %70 = vector.extract_strided_slice %52 {offsets = [0, 256], sizes = [8, 128], strides = [1, 1]} : vector<8x384xf32> to vector<8x128xf32>
    %71 = arith.addf %70, %12 : vector<8x128xf32>
    %72 = arith.mulf %60, %71 : vector<8x128xf32>
    %73 = arith.addf %69, %72 : vector<8x128xf32>
    %74 = math.tanh %73 : vector<8x128xf32>
    %75 = arith.subf %48, %74 : vector<8x128xf32>
    %76 = arith.mulf %68, %75 : vector<8x128xf32>
    %77 = arith.addf %74, %76 : vector<8x128xf32>
    %78 = vector.broadcast %c1_i32 : i32 to vector<8x1xi32>
    %79 = arith.cmpi slt, %78, %13 : vector<8x1xi32>
    %80 = vector.shape_cast %79 : vector<8x1xi1> to vector<8x1xi1>
    %81 = vector.broadcast %80 : vector<8x1xi1> to vector<8x128xi1>
    %82 = arith.select %81, %77, %48 : vector<8x128xi1>, vector<8x128xf32>
    %c2_i32 = arith.constant 2 : i32
    %83 = arith.index_cast %c2_i32 : i32 to index
    %c0_25 = arith.constant 0 : index
    %c0_26 = arith.constant 0 : index
    %84 = vector.load %arg10[%83, %c0_25, %c0_26] : memref<8x8x384xf32, #tpu.memory_space<vmem>>, vector<1x8x384xf32>
    %85 = vector.shape_cast %84 : vector<1x8x384xf32> to vector<8x384xf32>
    %cst_27 = arith.constant dense<0.000000e+00> : vector<8x384xf32>
    %86 = tpu.matmul %82, %9, %cst_27 {dimension_numbers = #tpu.dot_dimension_numbers<[1], [0], [0], [1], [0, 0, 1, 1], [], []>} : vector<8x128xf32>, vector<128x384xf32>, vector<8x384xf32> -> vector<8x384xf32>
    %87 = vector.extract_strided_slice %85 {offsets = [0, 0], sizes = [8, 128], strides = [1, 1]} : vector<8x384xf32> to vector<8x128xf32>
    %88 = vector.extract_strided_slice %86 {offsets = [0, 0], sizes = [8, 128], strides = [1, 1]} : vector<8x384xf32> to vector<8x128xf32>
    %89 = arith.addf %87, %88 : vector<8x128xf32>
    %90 = arith.negf %89 : vector<8x128xf32>
    %91 = math.exp %90 : vector<8x128xf32>
    %cst_28 = arith.constant 1.000000e+00 : f32
    %92 = vector.broadcast %cst_28 : f32 to vector<8x128xf32>
    %93 = arith.addf %92, %91 : vector<8x128xf32>
    %94 = arith.divf %92, %93 : vector<8x128xf32>
    %95 = vector.extract_strided_slice %85 {offsets = [0, 128], sizes = [8, 128], strides = [1, 1]} : vector<8x384xf32> to vector<8x128xf32>
    %96 = vector.extract_strided_slice %86 {offsets = [0, 128], sizes = [8, 128], strides = [1, 1]} : vector<8x384xf32> to vector<8x128xf32>
    %97 = arith.addf %95, %96 : vector<8x128xf32>
    %98 = arith.negf %97 : vector<8x128xf32>
    %99 = math.exp %98 : vector<8x128xf32>
    %cst_29 = arith.constant 1.000000e+00 : f32
    %100 = vector.broadcast %cst_29 : f32 to vector<8x128xf32>
    %101 = arith.addf %100, %99 : vector<8x128xf32>
    %102 = arith.divf %100, %101 : vector<8x128xf32>
    %103 = vector.extract_strided_slice %85 {offsets = [0, 256], sizes = [8, 128], strides = [1, 1]} : vector<8x384xf32> to vector<8x128xf32>
    %104 = vector.extract_strided_slice %86 {offsets = [0, 256], sizes = [8, 128], strides = [1, 1]} : vector<8x384xf32> to vector<8x128xf32>
    %105 = arith.addf %104, %12 : vector<8x128xf32>
    %106 = arith.mulf %94, %105 : vector<8x128xf32>
    %107 = arith.addf %103, %106 : vector<8x128xf32>
    %108 = math.tanh %107 : vector<8x128xf32>
    %109 = arith.subf %82, %108 : vector<8x128xf32>
    %110 = arith.mulf %102, %109 : vector<8x128xf32>
    %111 = arith.addf %108, %110 : vector<8x128xf32>
    %112 = vector.broadcast %c2_i32 : i32 to vector<8x1xi32>
    %113 = arith.cmpi slt, %112, %13 : vector<8x1xi32>
    %114 = vector.shape_cast %113 : vector<8x1xi1> to vector<8x1xi1>
    %115 = vector.broadcast %114 : vector<8x1xi1> to vector<8x128xi1>
    %116 = arith.select %115, %111, %82 : vector<8x128xi1>, vector<8x128xf32>
    %c3_i32 = arith.constant 3 : i32
    %117 = arith.index_cast %c3_i32 : i32 to index
    %c0_30 = arith.constant 0 : index
    %c0_31 = arith.constant 0 : index
    %118 = vector.load %arg10[%117, %c0_30, %c0_31] : memref<8x8x384xf32, #tpu.memory_space<vmem>>, vector<1x8x384xf32>
    %119 = vector.shape_cast %118 : vector<1x8x384xf32> to vector<8x384xf32>
    %cst_32 = arith.constant dense<0.000000e+00> : vector<8x384xf32>
    %120 = tpu.matmul %116, %9, %cst_32 {dimension_numbers = #tpu.dot_dimension_numbers<[1], [0], [0], [1], [0, 0, 1, 1], [], []>} : vector<8x128xf32>, vector<128x384xf32>, vector<8x384xf32> -> vector<8x384xf32>
    %121 = vector.extract_strided_slice %119 {offsets = [0, 0], sizes = [8, 128], strides = [1, 1]} : vector<8x384xf32> to vector<8x128xf32>
    %122 = vector.extract_strided_slice %120 {offsets = [0, 0], sizes = [8, 128], strides = [1, 1]} : vector<8x384xf32> to vector<8x128xf32>
    %123 = arith.addf %121, %122 : vector<8x128xf32>
    %124 = arith.negf %123 : vector<8x128xf32>
    %125 = math.exp %124 : vector<8x128xf32>
    %cst_33 = arith.constant 1.000000e+00 : f32
    %126 = vector.broadcast %cst_33 : f32 to vector<8x128xf32>
    %127 = arith.addf %126, %125 : vector<8x128xf32>
    %128 = arith.divf %126, %127 : vector<8x128xf32>
    %129 = vector.extract_strided_slice %119 {offsets = [0, 128], sizes = [8, 128], strides = [1, 1]} : vector<8x384xf32> to vector<8x128xf32>
    %130 = vector.extract_strided_slice %120 {offsets = [0, 128], sizes = [8, 128], strides = [1, 1]} : vector<8x384xf32> to vector<8x128xf32>
    %131 = arith.addf %129, %130 : vector<8x128xf32>
    %132 = arith.negf %131 : vector<8x128xf32>
    %133 = math.exp %132 : vector<8x128xf32>
    %cst_34 = arith.constant 1.000000e+00 : f32
    %134 = vector.broadcast %cst_34 : f32 to vector<8x128xf32>
    %135 = arith.addf %134, %133 : vector<8x128xf32>
    %136 = arith.divf %134, %135 : vector<8x128xf32>
    %137 = vector.extract_strided_slice %119 {offsets = [0, 256], sizes = [8, 128], strides = [1, 1]} : vector<8x384xf32> to vector<8x128xf32>
    %138 = vector.extract_strided_slice %120 {offsets = [0, 256], sizes = [8, 128], strides = [1, 1]} : vector<8x384xf32> to vector<8x128xf32>
    %139 = arith.addf %138, %12 : vector<8x128xf32>
    %140 = arith.mulf %128, %139 : vector<8x128xf32>
    %141 = arith.addf %137, %140 : vector<8x128xf32>
    %142 = math.tanh %141 : vector<8x128xf32>
    %143 = arith.subf %116, %142 : vector<8x128xf32>
    %144 = arith.mulf %136, %143 : vector<8x128xf32>
    %145 = arith.addf %142, %144 : vector<8x128xf32>
    %146 = vector.broadcast %c3_i32 : i32 to vector<8x1xi32>
    %147 = arith.cmpi slt, %146, %13 : vector<8x1xi32>
    %148 = vector.shape_cast %147 : vector<8x1xi1> to vector<8x1xi1>
    %149 = vector.broadcast %148 : vector<8x1xi1> to vector<8x128xi1>
    %150 = arith.select %149, %145, %116 : vector<8x128xi1>, vector<8x128xf32>
    %c4_i32 = arith.constant 4 : i32
    %151 = arith.index_cast %c4_i32 : i32 to index
    %c0_35 = arith.constant 0 : index
    %c0_36 = arith.constant 0 : index
    %152 = vector.load %arg10[%151, %c0_35, %c0_36] : memref<8x8x384xf32, #tpu.memory_space<vmem>>, vector<1x8x384xf32>
    %153 = vector.shape_cast %152 : vector<1x8x384xf32> to vector<8x384xf32>
    %cst_37 = arith.constant dense<0.000000e+00> : vector<8x384xf32>
    %154 = tpu.matmul %150, %9, %cst_37 {dimension_numbers = #tpu.dot_dimension_numbers<[1], [0], [0], [1], [0, 0, 1, 1], [], []>} : vector<8x128xf32>, vector<128x384xf32>, vector<8x384xf32> -> vector<8x384xf32>
    %155 = vector.extract_strided_slice %153 {offsets = [0, 0], sizes = [8, 128], strides = [1, 1]} : vector<8x384xf32> to vector<8x128xf32>
    %156 = vector.extract_strided_slice %154 {offsets = [0, 0], sizes = [8, 128], strides = [1, 1]} : vector<8x384xf32> to vector<8x128xf32>
    %157 = arith.addf %155, %156 : vector<8x128xf32>
    %158 = arith.negf %157 : vector<8x128xf32>
    %159 = math.exp %158 : vector<8x128xf32>
    %cst_38 = arith.constant 1.000000e+00 : f32
    %160 = vector.broadcast %cst_38 : f32 to vector<8x128xf32>
    %161 = arith.addf %160, %159 : vector<8x128xf32>
    %162 = arith.divf %160, %161 : vector<8x128xf32>
    %163 = vector.extract_strided_slice %153 {offsets = [0, 128], sizes = [8, 128], strides = [1, 1]} : vector<8x384xf32> to vector<8x128xf32>
    %164 = vector.extract_strided_slice %154 {offsets = [0, 128], sizes = [8, 128], strides = [1, 1]} : vector<8x384xf32> to vector<8x128xf32>
    %165 = arith.addf %163, %164 : vector<8x128xf32>
    %166 = arith.negf %165 : vector<8x128xf32>
    %167 = math.exp %166 : vector<8x128xf32>
    %cst_39 = arith.constant 1.000000e+00 : f32
    %168 = vector.broadcast %cst_39 : f32 to vector<8x128xf32>
    %169 = arith.addf %168, %167 : vector<8x128xf32>
    %170 = arith.divf %168, %169 : vector<8x128xf32>
    %171 = vector.extract_strided_slice %153 {offsets = [0, 256], sizes = [8, 128], strides = [1, 1]} : vector<8x384xf32> to vector<8x128xf32>
    %172 = vector.extract_strided_slice %154 {offsets = [0, 256], sizes = [8, 128], strides = [1, 1]} : vector<8x384xf32> to vector<8x128xf32>
    %173 = arith.addf %172, %12 : vector<8x128xf32>
    %174 = arith.mulf %162, %173 : vector<8x128xf32>
    %175 = arith.addf %171, %174 : vector<8x128xf32>
    %176 = math.tanh %175 : vector<8x128xf32>
    %177 = arith.subf %150, %176 : vector<8x128xf32>
    %178 = arith.mulf %170, %177 : vector<8x128xf32>
    %179 = arith.addf %176, %178 : vector<8x128xf32>
    %180 = vector.broadcast %c4_i32 : i32 to vector<8x1xi32>
    %181 = arith.cmpi slt, %180, %13 : vector<8x1xi32>
    %182 = vector.shape_cast %181 : vector<8x1xi1> to vector<8x1xi1>
    %183 = vector.broadcast %182 : vector<8x1xi1> to vector<8x128xi1>
    %184 = arith.select %183, %179, %150 : vector<8x128xi1>, vector<8x128xf32>
    %c5_i32 = arith.constant 5 : i32
    %185 = arith.index_cast %c5_i32 : i32 to index
    %c0_40 = arith.constant 0 : index
    %c0_41 = arith.constant 0 : index
    %186 = vector.load %arg10[%185, %c0_40, %c0_41] : memref<8x8x384xf32, #tpu.memory_space<vmem>>, vector<1x8x384xf32>
    %187 = vector.shape_cast %186 : vector<1x8x384xf32> to vector<8x384xf32>
    %cst_42 = arith.constant dense<0.000000e+00> : vector<8x384xf32>
    %188 = tpu.matmul %184, %9, %cst_42 {dimension_numbers = #tpu.dot_dimension_numbers<[1], [0], [0], [1], [0, 0, 1, 1], [], []>} : vector<8x128xf32>, vector<128x384xf32>, vector<8x384xf32> -> vector<8x384xf32>
    %189 = vector.extract_strided_slice %187 {offsets = [0, 0], sizes = [8, 128], strides = [1, 1]} : vector<8x384xf32> to vector<8x128xf32>
    %190 = vector.extract_strided_slice %188 {offsets = [0, 0], sizes = [8, 128], strides = [1, 1]} : vector<8x384xf32> to vector<8x128xf32>
    %191 = arith.addf %189, %190 : vector<8x128xf32>
    %192 = arith.negf %191 : vector<8x128xf32>
    %193 = math.exp %192 : vector<8x128xf32>
    %cst_43 = arith.constant 1.000000e+00 : f32
    %194 = vector.broadcast %cst_43 : f32 to vector<8x128xf32>
    %195 = arith.addf %194, %193 : vector<8x128xf32>
    %196 = arith.divf %194, %195 : vector<8x128xf32>
    %197 = vector.extract_strided_slice %187 {offsets = [0, 128], sizes = [8, 128], strides = [1, 1]} : vector<8x384xf32> to vector<8x128xf32>
    %198 = vector.extract_strided_slice %188 {offsets = [0, 128], sizes = [8, 128], strides = [1, 1]} : vector<8x384xf32> to vector<8x128xf32>
    %199 = arith.addf %197, %198 : vector<8x128xf32>
    %200 = arith.negf %199 : vector<8x128xf32>
    %201 = math.exp %200 : vector<8x128xf32>
    %cst_44 = arith.constant 1.000000e+00 : f32
    %202 = vector.broadcast %cst_44 : f32 to vector<8x128xf32>
    %203 = arith.addf %202, %201 : vector<8x128xf32>
    %204 = arith.divf %202, %203 : vector<8x128xf32>
    %205 = vector.extract_strided_slice %187 {offsets = [0, 256], sizes = [8, 128], strides = [1, 1]} : vector<8x384xf32> to vector<8x128xf32>
    %206 = vector.extract_strided_slice %188 {offsets = [0, 256], sizes = [8, 128], strides = [1, 1]} : vector<8x384xf32> to vector<8x128xf32>
    %207 = arith.addf %206, %12 : vector<8x128xf32>
    %208 = arith.mulf %196, %207 : vector<8x128xf32>
    %209 = arith.addf %205, %208 : vector<8x128xf32>
    %210 = math.tanh %209 : vector<8x128xf32>
    %211 = arith.subf %184, %210 : vector<8x128xf32>
    %212 = arith.mulf %204, %211 : vector<8x128xf32>
    %213 = arith.addf %210, %212 : vector<8x128xf32>
    %214 = vector.broadcast %c5_i32 : i32 to vector<8x1xi32>
    %215 = arith.cmpi slt, %214, %13 : vector<8x1xi32>
    %216 = vector.shape_cast %215 : vector<8x1xi1> to vector<8x1xi1>
    %217 = vector.broadcast %216 : vector<8x1xi1> to vector<8x128xi1>
    %218 = arith.select %217, %213, %184 : vector<8x128xi1>, vector<8x128xf32>
    %c6_i32 = arith.constant 6 : i32
    %219 = arith.index_cast %c6_i32 : i32 to index
    %c0_45 = arith.constant 0 : index
    %c0_46 = arith.constant 0 : index
    %220 = vector.load %arg10[%219, %c0_45, %c0_46] : memref<8x8x384xf32, #tpu.memory_space<vmem>>, vector<1x8x384xf32>
    %221 = vector.shape_cast %220 : vector<1x8x384xf32> to vector<8x384xf32>
    %cst_47 = arith.constant dense<0.000000e+00> : vector<8x384xf32>
    %222 = tpu.matmul %218, %9, %cst_47 {dimension_numbers = #tpu.dot_dimension_numbers<[1], [0], [0], [1], [0, 0, 1, 1], [], []>} : vector<8x128xf32>, vector<128x384xf32>, vector<8x384xf32> -> vector<8x384xf32>
    %223 = vector.extract_strided_slice %221 {offsets = [0, 0], sizes = [8, 128], strides = [1, 1]} : vector<8x384xf32> to vector<8x128xf32>
    %224 = vector.extract_strided_slice %222 {offsets = [0, 0], sizes = [8, 128], strides = [1, 1]} : vector<8x384xf32> to vector<8x128xf32>
    %225 = arith.addf %223, %224 : vector<8x128xf32>
    %226 = arith.negf %225 : vector<8x128xf32>
    %227 = math.exp %226 : vector<8x128xf32>
    %cst_48 = arith.constant 1.000000e+00 : f32
    %228 = vector.broadcast %cst_48 : f32 to vector<8x128xf32>
    %229 = arith.addf %228, %227 : vector<8x128xf32>
    %230 = arith.divf %228, %229 : vector<8x128xf32>
    %231 = vector.extract_strided_slice %221 {offsets = [0, 128], sizes = [8, 128], strides = [1, 1]} : vector<8x384xf32> to vector<8x128xf32>
    %232 = vector.extract_strided_slice %222 {offsets = [0, 128], sizes = [8, 128], strides = [1, 1]} : vector<8x384xf32> to vector<8x128xf32>
    %233 = arith.addf %231, %232 : vector<8x128xf32>
    %234 = arith.negf %233 : vector<8x128xf32>
    %235 = math.exp %234 : vector<8x128xf32>
    %cst_49 = arith.constant 1.000000e+00 : f32
    %236 = vector.broadcast %cst_49 : f32 to vector<8x128xf32>
    %237 = arith.addf %236, %235 : vector<8x128xf32>
    %238 = arith.divf %236, %237 : vector<8x128xf32>
    %239 = vector.extract_strided_slice %221 {offsets = [0, 256], sizes = [8, 128], strides = [1, 1]} : vector<8x384xf32> to vector<8x128xf32>
    %240 = vector.extract_strided_slice %222 {offsets = [0, 256], sizes = [8, 128], strides = [1, 1]} : vector<8x384xf32> to vector<8x128xf32>
    %241 = arith.addf %240, %12 : vector<8x128xf32>
    %242 = arith.mulf %230, %241 : vector<8x128xf32>
    %243 = arith.addf %239, %242 : vector<8x128xf32>
    %244 = math.tanh %243 : vector<8x128xf32>
    %245 = arith.subf %218, %244 : vector<8x128xf32>
    %246 = arith.mulf %238, %245 : vector<8x128xf32>
    %247 = arith.addf %244, %246 : vector<8x128xf32>
    %248 = vector.broadcast %c6_i32 : i32 to vector<8x1xi32>
    %249 = arith.cmpi slt, %248, %13 : vector<8x1xi32>
    %250 = vector.shape_cast %249 : vector<8x1xi1> to vector<8x1xi1>
    %251 = vector.broadcast %250 : vector<8x1xi1> to vector<8x128xi1>
    %252 = arith.select %251, %247, %218 : vector<8x128xi1>, vector<8x128xf32>
    %c7_i32 = arith.constant 7 : i32
    %253 = arith.index_cast %c7_i32 : i32 to index
    %c0_50 = arith.constant 0 : index
    %c0_51 = arith.constant 0 : index
    %254 = vector.load %arg10[%253, %c0_50, %c0_51] : memref<8x8x384xf32, #tpu.memory_space<vmem>>, vector<1x8x384xf32>
    %255 = vector.shape_cast %254 : vector<1x8x384xf32> to vector<8x384xf32>
    %cst_52 = arith.constant dense<0.000000e+00> : vector<8x384xf32>
    %256 = tpu.matmul %252, %9, %cst_52 {dimension_numbers = #tpu.dot_dimension_numbers<[1], [0], [0], [1], [0, 0, 1, 1], [], []>} : vector<8x128xf32>, vector<128x384xf32>, vector<8x384xf32> -> vector<8x384xf32>
    %257 = vector.extract_strided_slice %255 {offsets = [0, 0], sizes = [8, 128], strides = [1, 1]} : vector<8x384xf32> to vector<8x128xf32>
    %258 = vector.extract_strided_slice %256 {offsets = [0, 0], sizes = [8, 128], strides = [1, 1]} : vector<8x384xf32> to vector<8x128xf32>
    %259 = arith.addf %257, %258 : vector<8x128xf32>
    %260 = arith.negf %259 : vector<8x128xf32>
    %261 = math.exp %260 : vector<8x128xf32>
    %cst_53 = arith.constant 1.000000e+00 : f32
    %262 = vector.broadcast %cst_53 : f32 to vector<8x128xf32>
    %263 = arith.addf %262, %261 : vector<8x128xf32>
    %264 = arith.divf %262, %263 : vector<8x128xf32>
    %265 = vector.extract_strided_slice %255 {offsets = [0, 128], sizes = [8, 128], strides = [1, 1]} : vector<8x384xf32> to vector<8x128xf32>
    %266 = vector.extract_strided_slice %256 {offsets = [0, 128], sizes = [8, 128], strides = [1, 1]} : vector<8x384xf32> to vector<8x128xf32>
    %267 = arith.addf %265, %266 : vector<8x128xf32>
    %268 = arith.negf %267 : vector<8x128xf32>
    %269 = math.exp %268 : vector<8x128xf32>
    %cst_54 = arith.constant 1.000000e+00 : f32
    %270 = vector.broadcast %cst_54 : f32 to vector<8x128xf32>
    %271 = arith.addf %270, %269 : vector<8x128xf32>
    %272 = arith.divf %270, %271 : vector<8x128xf32>
    %273 = vector.extract_strided_slice %255 {offsets = [0, 256], sizes = [8, 128], strides = [1, 1]} : vector<8x384xf32> to vector<8x128xf32>
    %274 = vector.extract_strided_slice %256 {offsets = [0, 256], sizes = [8, 128], strides = [1, 1]} : vector<8x384xf32> to vector<8x128xf32>
    %275 = arith.addf %274, %12 : vector<8x128xf32>
    %276 = arith.mulf %264, %275 : vector<8x128xf32>
    %277 = arith.addf %273, %276 : vector<8x128xf32>
    %278 = math.tanh %277 : vector<8x128xf32>
    %279 = arith.subf %252, %278 : vector<8x128xf32>
    %280 = arith.mulf %272, %279 : vector<8x128xf32>
    %281 = arith.addf %278, %280 : vector<8x128xf32>
    %282 = vector.broadcast %c7_i32 : i32 to vector<8x1xi32>
    %283 = arith.cmpi slt, %282, %13 : vector<8x1xi32>
    %284 = vector.shape_cast %283 : vector<8x1xi1> to vector<8x1xi1>
    %285 = vector.broadcast %284 : vector<8x1xi1> to vector<8x128xi1>
    %286 = arith.select %285, %281, %252 : vector<8x128xi1>, vector<8x128xf32>
    %c8_i32 = arith.constant 8 : i32
    %c0_55 = arith.constant 0 : index
    %c0_56 = arith.constant 0 : index
    %287 = vector.load %arg9[%c0_55, %c0_56] : memref<8x128xf32, #tpu.memory_space<vmem>>, vector<8x128xf32>
    tpu.vector_store %arg9[%c0_55, %c0_56], %286 {strides = array<i32>} : memref<8x128xf32, #tpu.memory_space<vmem>>, vector<8x128xf32>,
    %c0_57 = arith.constant 0 : index
    %c0_58 = arith.constant 0 : index
    %288 = vector.load %arg6[%c0_57, %c0_58] : memref<128x128xf32, #tpu.memory_space<vmem>>, vector<128x128xf32>
    %cst_59 = arith.constant dense<0.000000e+00> : vector<8x128xf32>
    %289 = tpu.matmul %286, %288, %cst_59 {dimension_numbers = #tpu.dot_dimension_numbers<[1], [0], [0], [1], [0, 0, 1, 1], [], []>} : vector<8x128xf32>, vector<128x128xf32>, vector<8x128xf32> -> vector<8x128xf32>
    %c0_60 = arith.constant 0 : index
    %c0_61 = arith.constant 0 : index
    %290 = vector.load %arg7[%c0_60, %c0_61] : memref<1x128xf32, #tpu.memory_space<vmem>>, vector<1x128xf32>
    %291 = vector.broadcast %290 : vector<1x128xf32> to vector<8x128xf32>
    %292 = arith.addf %289, %291 : vector<8x128xf32>
    %c0_62 = arith.constant 0 : index
    %c0_63 = arith.constant 0 : index
    %293 = vector.load %arg8[%c0_62, %c0_63] : memref<8x128xf32, #tpu.memory_space<vmem>>, vector<8x128xf32>
    tpu.vector_store %arg8[%c0_62, %c0_63], %292 {strides = array<i32>} : memref<8x128xf32, #tpu.memory_space<vmem>>, vector<8x128xf32>,
    return
  }
}

</mosaic_0001>

<llo_original>
// kernel: tpu_custom_call.1
$region0: #{tpu_custom_call.1}
  #allocation0 [shape = 'u32[]', space=smem, size = 0x4, offset = 0x4, fixed_abs, tag = 'smem constant byte address 0x4 - core index']
  #allocation1 [shape = 'u32[144,128]{1,0:T(1,128)}', space=vmem, size = 0x12000, scoped, tag = 'internal scratch']
  #allocation2 [shape = 'f32[8,8,384]{2,1,0:T(8,128)}', space=vmem, size = 0x18000, scoped, tag = 'scratch operand']
  %s0 = inlined_call_operand.vmem [shape: s32[8,1], index: 0, kind: input, shape index: {}]
  %s1 = inlined_call_operand.vmem [shape: f32[64,4], index: 1, kind: input, shape index: {}]
  %s2 = inlined_call_operand.vmem [shape: f32[4,384], index: 2, kind: input, shape index: {}]
  %s3 = inlined_call_operand.hbm [shape: f32[128,384], index: 3, kind: input, shape index: {}]
  %s4 = inlined_call_operand.vmem [shape: f32[1,384], index: 4, kind: input, shape index: {}]
  %s5 = inlined_call_operand.vmem [shape: f32[1,128], index: 5, kind: input, shape index: {}]
  %s6 = inlined_call_operand.hbm [shape: f32[128,128], index: 6, kind: input, shape index: {}]
  %s7 = inlined_call_operand.vmem [shape: f32[1,128], index: 7, kind: input, shape index: {}]
  %s8 = inlined_call_operand.hbm [shape: f32[8,128], index: 8, kind: output, shape index: {0}]
  %s9 = inlined_call_operand.hbm [shape: f32[8,128], index: 9, kind: output, shape index: {1}]
  %10 = xla_tuple %s8, %s9
  %s11 = sld [smem:[#allocation0]]
  $region58: #{tpu_custom_call.1} parent=0
    _
  %s13 = ssub.s32 1, %s11
  %s14 = scalar_select 0, %s13, %s11
  $region1: #{tpu_custom_call.1} parent=0
    #allocation3 [shape = 'u8[196608]{0}', space=vmem, size = 0x30000, scoped, tag = 'input window, operand 3, single buffered']
    #allocation4 [shape = 's32[1]{0}', space=sflag, size = 0x4, scoped, tag = 'scoped memory for tpu_custom_call.1']
    #allocation5 [shape = 's32[1]{0}', space=sflag, size = 0x4, scoped, tag = 'scoped memory for tpu_custom_call.1']
    #allocation6 [shape = 'u8[65536]{0}', space=vmem, size = 0x10000, scoped, tag = 'input window, operand 6, single buffered']
    #allocation7 [shape = 's32[1]{0}', space=sflag, size = 0x4, scoped, tag = 'scoped memory for tpu_custom_call.1']
    #allocation8 [shape = 'u8[4096]{0}', space=vmem, size = 0x1000, scoped, tag = 'output window, operand 0, single buffered']
    #allocation9 [shape = 'u8[4096]{0}', space=vmem, size = 0x1000, scoped, tag = 'output window, operand 1, single buffered']
    #allocation10 [shape = 's32[1]{0}', space=sflag, size = 0x4, scoped, tag = 'scoped memory for tpu_custom_call.1']
    %15 = vsyncpa [#allocation4], 0
    %16 = vsyncpa [#allocation7], 0
    %17 = vsyncpa [#allocation5], 0
    %18 = vsyncpa [#allocation10], 0
    // Predicated region
    $region2: #{tpu_custom_call.1} parent=1 // pred_check
      _
    $region3: #{tpu_custom_call.1} parent=1 // pred_check_branch
      %20 = sbr.rel (0) target = $region5
    $region4: #{tpu_custom_call.1} parent=1 // pred_region
      _
    $region5: #{tpu_custom_call.1} parent=1 // pred_fallthru
      _
    // Predicated region
    $region6: #{tpu_custom_call.1} parent=1 // pred_check
      _
    $region7: #{tpu_custom_call.1} parent=1 // pred_check_branch
      %22 = sbr.rel (0) target = $region9
    $region8: #{tpu_custom_call.1} parent=1 // pred_region
      _
    $region9: #{tpu_custom_call.1} parent=1 // pred_fallthru
      _
    // Predicated region
    $region10: #{tpu_custom_call.1} parent=1 // pred_check
      _
    $region11: #{tpu_custom_call.1} parent=1 // pred_check_branch
      %24 = sbr.rel (0) target = $region13
    $region12: #{tpu_custom_call.1} parent=1 // pred_region
      _
    $region13: #{tpu_custom_call.1} parent=1 // pred_fallthru
      _
    // Predicated region
    $region14: #{tpu_custom_call.1} parent=1 // pred_check
      _
    $region15: #{tpu_custom_call.1} parent=1 // pred_check_branch
      %26 = sbr.rel (0) target = $region17
    $region16: #{tpu_custom_call.1} parent=1 // pred_region
      %s28 = ssub.s32 6144, 6144
      %29 = vsyncadd [#allocation4], %s28
      %s30 = sshll.u32 [#allocation3], 4
      %s31 = int_to_ptr.vmem [resolvable:$true] %s30
      %36 = dma.hbm_to_vmem [thread:$0]  %s3, 6144, %s31, [#allocation4], 384, 384, 24
    $region17: #{tpu_custom_call.1} parent=1 // pred_fallthru
      _
    // Predicated region
    $region18: #{tpu_custom_call.1} parent=1 // pred_check
      _
    $region19: #{tpu_custom_call.1} parent=1 // pred_check_branch
      %38 = sbr.rel (0) target = $region21
    $region20: #{tpu_custom_call.1} parent=1 // pred_region
      _
    $region21: #{tpu_custom_call.1} parent=1 // pred_fallthru
      _
    // Predicated region
    $region22: #{tpu_custom_call.1} parent=1 // pred_check
      _
    $region23: #{tpu_custom_call.1} parent=1 // pred_check_branch
      %40 = sbr.rel (0) target = $region25
    $region24: #{tpu_custom_call.1} parent=1 // pred_region
      _
    $region25: #{tpu_custom_call.1} parent=1 // pred_fallthru
      _
    // Predicated region
    $region26: #{tpu_custom_call.1} parent=1 // pred_check
      _
    $region27: #{tpu_custom_call.1} parent=1 // pred_check_branch
      %42 = sbr.rel (0) target = $region29
    $region28: #{tpu_custom_call.1} parent=1 // pred_region
      %s44 = ssub.s32 2048, 2048
      %45 = vsyncadd [#allocation7], %s44
      %s46 = sshll.u32 [#allocation6], 4
      %s47 = int_to_ptr.vmem [resolvable:$true] %s46
      %52 = dma.hbm_to_vmem [thread:$0]  %s6, 2048, %s47, [#allocation7], 128, 128, 8
    $region29: #{tpu_custom_call.1} parent=1 // pred_fallthru
      _
    // Predicated region
    $region30: #{tpu_custom_call.1} parent=1 // pred_check
      _
    $region31: #{tpu_custom_call.1} parent=1 // pred_check_branch
      %54 = sbr.rel (0) target = $region33
    $region32: #{tpu_custom_call.1} parent=1 // pred_region
      _
    $region33: #{tpu_custom_call.1} parent=1 // pred_fallthru
      _
    // Predicated region
    $region34: #{tpu_custom_call.1} parent=1 // pred_check
      _
    $region35: #{tpu_custom_call.1} parent=1 // pred_check_branch
      %56 = sbr.rel (0) target = $region37
    $region36: #{tpu_custom_call.1} parent=1 // pred_region
      %57 = dma.done [#allocation4], 6144
    $region37: #{tpu_custom_call.1} parent=1 // pred_fallthru
      _
    // Predicated region
    $region38: #{tpu_custom_call.1} parent=1 // pred_check
      _
    $region39: #{tpu_custom_call.1} parent=1 // pred_check_branch
      %59 = sbr.rel (0) target = $region41
    $region40: #{tpu_custom_call.1} parent=1 // pred_region
      %60 = dma.done [#allocation7], 2048
    $region41: #{tpu_custom_call.1} parent=1 // pred_fallthru
      _
    %v61 = vld [vmem:[%s1] sm:$0xff]
    %v62 = vld [vmem:[%s1 + $0x8] sm:$0xff]
    %v63 = vld [vmem:[%s1 + $0x10] sm:$0xff]
    %v64 = vld [vmem:[%s1 + $0x18] sm:$0xff]
    %v65 = vld [vmem:[%s1 + $0x20] sm:$0xff]
    %v66 = vld [vmem:[%s1 + $0x28] sm:$0xff]
    %v67 = vld [vmem:[%s1 + $0x30] sm:$0xff]
    %v68 = vld [vmem:[%s1 + $0x38] sm:$0xff]
    %v69 = vld [vmem:[%s2] sm:$0xff]
    %v70 = vld [vmem:[%s2 + $0x8] sm:$0xf]
    %v73 = vcombine.high %v69, %v69
    %vm74 = vcmask 31744
    %v76 = vsel %vm74, %v61, 0
    %v79 = vsel %vm74, %v62, 0
    %v82 = vsel %vm74, %v63, 0
    %v85 = vsel %vm74, %v64, 0
    %v88 = vsel %vm74, %v65, 0
    %v91 = vsel %vm74, %v66, 0
    %v94 = vsel %vm74, %v67, 0
    %v97 = vsel %vm74, %v68, 0
    %vm99 = vcmask 1043456
    %v100 = vsel %vm99, %v69, 0
    %v102 = vsel %vm99, %v73, 0
    %v104 = vsel %vm99, %v70, 0
    %106 = vmatprep.subr.mxu0 %v102
    %107 = vmatpush1.msra.mxu0 %v100
    %108 = vmatprep.subr.mxu0 0.0
    %109 = vmatpush1.msra.mxu0 0.0
    %110 = vmatprep.subr.mxu0 0.0
    %111 = vmatpush1.msra.mxu0 0.0
    %112 = vmatprep.subr.mxu0 0.0
    %113 = vmatpush1.msra.mxu0 0.0
    %114 = vmatprep.subr.mxu0 0.0
    %115 = vmatpush1.msra.mxu0 0.0
    %116 = vmatprep.subr.mxu0 0.0
    %117 = vmatpush1.msra.mxu0 0.0
    %118 = vmatprep.subr.mxu0 0.0
    %119 = vmatpush1.msra.mxu0 0.0
    %120 = vmatprep.subr.mxu0 0.0
    %121 = vmatpush1.msra.mxu0 0.0
    %122 = vmatprep.subr.mxu0 0.0
    %123 = vmatpush1.msra.mxu0 0.0
    %124 = vmatprep.subr.mxu0 0.0
    %125 = vmatpush1.msra.mxu0 0.0
    %126 = vmatprep.subr.mxu0 0.0
    %127 = vmatpush1.msra.mxu0 0.0
    %128 = vmatprep.subr.mxu0 0.0
    %129 = vmatpush1.msra.mxu0 0.0
    %130 = vmatprep.subr.mxu0 0.0
    %131 = vmatpush1.msra.mxu0 0.0
    %132 = vmatprep.subr.mxu0 0.0
    %133 = vmatpush1.msra.mxu0 0.0
    %134 = vmatprep.subr.mxu0 0.0
    %135 = vmatpush1.msra.mxu0 0.0
    %136 = vmatprep.subr.mxu0 0.0
    %137 = vmatpush1.msra.mxu0 0.0
    %138 = vmatprep.subr.mxu0 0.0
    %139 = vmatpush1.msra.mxu0 0.0
    %140 = vmatprep.subr.mxu0 0.0
    %141 = vmatpush1.msra.mxu0 0.0
    %142 = vmatprep.subr.mxu0 0.0
    %143 = vmatpush1.msra.mxu0 0.0
    %144 = vmatprep.subr.mxu0 0.0
    %145 = vmatpush1.msra.mxu0 0.0
    %146 = vmatprep.subr.mxu0 0.0
    %147 = vmatpush1.msra.mxu0 0.0
    %148 = vmatprep.subr.mxu0 0.0
    %149 = vmatpush1.msra.mxu0 0.0
    %150 = vmatprep.subr.mxu0 0.0
    %151 = vmatpush1.msra.mxu0 0.0
    %152 = vmatprep.subr.mxu0 0.0
    %153 = vmatpush1.msra.mxu0 0.0
    %154 = vmatprep.subr.mxu0 0.0
    %155 = vmatpush1.msra.mxu0 0.0
    %156 = vmatprep.subr.mxu0 0.0
    %157 = vmatpush1.msra.mxu0 0.0
    %158 = vmatprep.subr.mxu0 0.0
    %159 = vmatpush1.msra.mxu0 0.0
    %160 = vmatprep.subr.mxu0 0.0
    %161 = vmatpush1.msra.mxu0 0.0
    %162 = vmatprep.subr.mxu0 0.0
    %163 = vmatpush1.msra.mxu0 0.0
    %164 = vmatprep.subr.mxu0 0.0
    %165 = vmatpush1.msra.mxu0 0.0
    %166 = vmatprep.subr.mxu0 0.0
    %167 = vmatpush1.msra.mxu0 0.0
    %168 = vmatprep.subr.mxu0 0.0
    %169 = vmatpush1.msra.mxu0 0.0
    %170 = vmatprep.mubr.f32.mxu0 0.0
    %171 = vmatmul.mubr.f32.gmra.mrb[0].mxu0 %v76
    %v172 = vpop.f32.mrb[0].mxu0
    %v173 = vadd.f32 0.0, %v172
    %v174 = vpop.f32.mrb[0].mxu0
    %v175 = vadd.f32 0.0, %v174
    %176 = vmatprep.mubr.f32.mxu0 0.0
    %177 = vmatmul.mubr.f32.gmra.mrb[0].mxu0 %v79
    %v178 = vpop.f32.mrb[0].mxu0
    %v179 = vadd.f32 0.0, %v178
    %v180 = vpop.f32.mrb[0].mxu0
    %v181 = vadd.f32 0.0, %v180
    %182 = vmatprep.mubr.f32.mxu0 0.0
    %183 = vmatmul.mubr.f32.gmra.mrb[0].mxu0 %v82
    %v184 = vpop.f32.mrb[0].mxu0
    %v185 = vadd.f32 0.0, %v184
    %v186 = vpop.f32.mrb[0].mxu0
    %v187 = vadd.f32 0.0, %v186
    %188 = vmatprep.mubr.f32.mxu0 0.0
    %189 = vmatmul.mubr.f32.gmra.mrb[0].mxu0 %v85
    %v190 = vpop.f32.mrb[0].mxu0
    %v191 = vadd.f32 0.0, %v190
    %v192 = vpop.f32.mrb[0].mxu0
    %v193 = vadd.f32 0.0, %v192
    %194 = vmatprep.mubr.f32.mxu0 0.0
    %195 = vmatmul.mubr.f32.gmra.mrb[0].mxu0 %v88
    %v196 = vpop.f32.mrb[0].mxu0
    %v197 = vadd.f32 0.0, %v196
    %v198 = vpop.f32.mrb[0].mxu0
    %v199 = vadd.f32 0.0, %v198
    %200 = vmatprep.mubr.f32.mxu0 0.0
    %201 = vmatmul.mubr.f32.gmra.mrb[0].mxu0 %v91
    %v202 = vpop.f32.mrb[0].mxu0
    %v203 = vadd.f32 0.0, %v202
    %v204 = vpop.f32.mrb[0].mxu0
    %v205 = vadd.f32 0.0, %v204
    %206 = vmatprep.mubr.f32.mxu0 0.0
    %207 = vmatmul.mubr.f32.gmra.mrb[0].mxu0 %v94
    %v208 = vpop.f32.mrb[0].mxu0
    %v209 = vadd.f32 0.0, %v208
    %v210 = vpop.f32.mrb[0].mxu0
    %v211 = vadd.f32 0.0, %v210
    %212 = vmatprep.mubr.f32.mxu0 0.0
    %213 = vmatmul.mubr.f32.gmra.mrb[0].mxu0 %v97
    %v214 = vpop.f32.mrb[0].mxu0
    %v215 = vadd.f32 0.0, %v214
    %v216 = vpop.f32.mrb[0].mxu0
    %v217 = vadd.f32 0.0, %v216
    %218 = vdwg.mxu0
    %219 = vmatprep.subr.mxu0 0.0
    %220 = vmatpush1.msra.mxu0 %v104
    %221 = vmatprep.subr.mxu0 0.0
    %222 = vmatpush1.msra.mxu0 0.0
    %223 = vmatprep.subr.mxu0 0.0
    %224 = vmatpush1.msra.mxu0 0.0
    %225 = vmatprep.subr.mxu0 0.0
    %226 = vmatpush1.msra.mxu0 0.0
    %227 = vmatprep.subr.mxu0 0.0
    %228 = vmatpush1.msra.mxu0 0.0
    %229 = vmatprep.subr.mxu0 0.0
    %230 = vmatpush1.msra.mxu0 0.0
    %231 = vmatprep.subr.mxu0 0.0
    %232 = vmatpush1.msra.mxu0 0.0
    %233 = vmatprep.subr.mxu0 0.0
    %234 = vmatpush1.msra.mxu0 0.0
    %235 = vmatprep.subr.mxu0 0.0
    %236 = vmatpush1.msra.mxu0 0.0
    %237 = vmatprep.subr.mxu0 0.0
    %238 = vmatpush1.msra.mxu0 0.0
    %239 = vmatprep.subr.mxu0 0.0
    %240 = vmatpush1.msra.mxu0 0.0
    %241 = vmatprep.subr.mxu0 0.0
    %242 = vmatpush1.msra.mxu0 0.0
    %243 = vmatprep.subr.mxu0 0.0
    %244 = vmatpush1.msra.mxu0 0.0
    %245 = vmatprep.subr.mxu0 0.0
    %246 = vmatpush1.msra.mxu0 0.0
    %247 = vmatprep.subr.mxu0 0.0
    %248 = vmatpush1.msra.mxu0 0.0
    %249 = vmatprep.subr.mxu0 0.0
    %250 = vmatpush1.msra.mxu0 0.0
    %251 = vmatprep.subr.mxu0 0.0
    %252 = vmatpush1.msra.mxu0 0.0
    %253 = vmatprep.subr.mxu0 0.0
    %254 = vmatpush1.msra.mxu0 0.0
    %255 = vmatprep.subr.mxu0 0.0
    %256 = vmatpush1.msra.mxu0 0.0
    %257 = vmatprep.subr.mxu0 0.0
    %258 = vmatpush1.msra.mxu0 0.0
    %259 = vmatprep.subr.mxu0 0.0
    %260 = vmatpush1.msra.mxu0 0.0
    %261 = vmatprep.subr.mxu0 0.0
    %262 = vmatpush1.msra.mxu0 0.0
    %263 = vmatprep.subr.mxu0 0.0
    %264 = vmatpush1.msra.mxu0 0.0
    %265 = vmatprep.subr.mxu0 0.0
    %266 = vmatpush1.msra.mxu0 0.0
    %267 = vmatprep.subr.mxu0 0.0
    %268 = vmatpush1.msra.mxu0 0.0
    %269 = vmatprep.subr.mxu0 0.0
    %270 = vmatpush1.msra.mxu0 0.0
    %271 = vmatprep.subr.mxu0 0.0
    %272 = vmatpush1.msra.mxu0 0.0
    %273 = vmatprep.subr.mxu0 0.0
    %274 = vmatpush1.msra.mxu0 0.0
    %275 = vmatprep.subr.mxu0 0.0
    %276 = vmatpush1.msra.mxu0 0.0
    %277 = vmatprep.subr.mxu0 0.0
    %278 = vmatpush1.msra.mxu0 0.0
    %279 = vmatprep.subr.mxu0 0.0
    %280 = vmatpush1.msra.mxu0 0.0
    %281 = vmatprep.subr.mxu0 0.0
    %282 = vmatpush1.msra.mxu0 0.0
    %283 = vmatprep.mubr.f32.mxu0 0.0
    %284 = vmatmul.mubr.f32.gmra.mrb[0].mxu0 %v76
    %v285 = vpop.f32.mrb[0].mxu0
    %v286 = vadd.f32 0.0, %v285
    %v287 = vpop.f32.mrb[0].mxu0
    %288 = vmatprep.mubr.f32.mxu0 0.0
    %289 = vmatmul.mubr.f32.gmra.mrb[0].mxu0 %v79
    %v290 = vpop.f32.mrb[0].mxu0
    %v291 = vadd.f32 0.0, %v290
    %v292 = vpop.f32.mrb[0].mxu0
    %293 = vmatprep.mubr.f32.mxu0 0.0
    %294 = vmatmul.mubr.f32.gmra.mrb[0].mxu0 %v82
    %v295 = vpop.f32.mrb[0].mxu0
    %v296 = vadd.f32 0.0, %v295
    %v297 = vpop.f32.mrb[0].mxu0
    %298 = vmatprep.mubr.f32.mxu0 0.0
    %299 = vmatmul.mubr.f32.gmra.mrb[0].mxu0 %v85
    %v300 = vpop.f32.mrb[0].mxu0
    %v301 = vadd.f32 0.0, %v300
    %v302 = vpop.f32.mrb[0].mxu0
    %303 = vmatprep.mubr.f32.mxu0 0.0
    %304 = vmatmul.mubr.f32.gmra.mrb[0].mxu0 %v88
    %v305 = vpop.f32.mrb[0].mxu0
    %v306 = vadd.f32 0.0, %v305
    %v307 = vpop.f32.mrb[0].mxu0
    %308 = vmatprep.mubr.f32.mxu0 0.0
    %309 = vmatmul.mubr.f32.gmra.mrb[0].mxu0 %v91
    %v310 = vpop.f32.mrb[0].mxu0
    %v311 = vadd.f32 0.0, %v310
    %v312 = vpop.f32.mrb[0].mxu0
    %313 = vmatprep.mubr.f32.mxu0 0.0
    %314 = vmatmul.mubr.f32.gmra.mrb[0].mxu0 %v94
    %v315 = vpop.f32.mrb[0].mxu0
    %v316 = vadd.f32 0.0, %v315
    %v317 = vpop.f32.mrb[0].mxu0
    %318 = vmatprep.mubr.f32.mxu0 0.0
    %319 = vmatmul.mubr.f32.gmra.mrb[0].mxu0 %v97
    %v320 = vpop.f32.mrb[0].mxu0
    %v321 = vadd.f32 0.0, %v320
    %v322 = vpop.f32.mrb[0].mxu0
    %323 = vdwg.mxu0
    %v324 = vld [vmem:[%s4] sm:$0x7]
    %v326 = vlaneseq
    %v327 = vshrl.u32 %v326, 7
    %v328 = vsub.s32 0, %v327
    %v329 = vrot.slane %v324, %v328
    %v330 = vlaneseq
    %v331 = vshrl.u32 %v330, 7
    %v332 = vsub.s32 1, %v331
    %v333 = vrot.slane %v324, %v332
    %v334 = vlaneseq
    %v335 = vshrl.u32 %v334, 7
    %v336 = vsub.s32 2, %v335
    %v337 = vrot.slane %v324, %v336
    %v341 = vadd.f32 %v173, %v329
    %v342 = vadd.f32 %v175, %v333
    %v343 = vadd.f32 %v286, %v337
    %v344 = vadd.f32 %v179, %v329
    %v345 = vadd.f32 %v181, %v333
    %v346 = vadd.f32 %v291, %v337
    %v347 = vadd.f32 %v185, %v329
    %v348 = vadd.f32 %v187, %v333
    %v349 = vadd.f32 %v296, %v337
    %v350 = vadd.f32 %v191, %v329
    %v351 = vadd.f32 %v193, %v333
    %v352 = vadd.f32 %v301, %v337
    %v353 = vadd.f32 %v197, %v329
    %v354 = vadd.f32 %v199, %v333
    %v355 = vadd.f32 %v306, %v337
    %v356 = vadd.f32 %v203, %v329
    %v357 = vadd.f32 %v205, %v333
    %v358 = vadd.f32 %v311, %v337
    %v359 = vadd.f32 %v209, %v329
    %v360 = vadd.f32 %v211, %v333
    %v361 = vadd.f32 %v316, %v337
    %v362 = vadd.f32 %v215, %v329
    %v363 = vadd.f32 %v217, %v333
    %v364 = vadd.f32 %v321, %v337
    %365 = vst [vmem:[#allocation2] sm:$0xff] %v341
    %366 = vst [vmem:[#allocation2 + $0x8] sm:$0xff] %v342
    %367 = vst [vmem:[#allocation2 + $0x10] sm:$0xff] %v343
    %368 = vst [vmem:[#allocation2 + $0x18] sm:$0xff] %v344
    %369 = vst [vmem:[#allocation2 + $0x20] sm:$0xff] %v345
    %370 = vst [vmem:[#allocation2 + $0x28] sm:$0xff] %v346
    %371 = vst [vmem:[#allocation2 + $0x30] sm:$0xff] %v347
    %372 = vst [vmem:[#allocation2 + $0x38] sm:$0xff] %v348
    %373 = vst [vmem:[#allocation2 + $0x40] sm:$0xff] %v349
    %374 = vst [vmem:[#allocation2 + $0x48] sm:$0xff] %v350
    %375 = vst [vmem:[#allocation2 + $0x50] sm:$0xff] %v351
    %376 = vst [vmem:[#allocation2 + $0x58] sm:$0xff] %v352
    %377 = vst [vmem:[#allocation2 + $0x60] sm:$0xff] %v353
    %378 = vst [vmem:[#allocation2 + $0x68] sm:$0xff] %v354
    %379 = vst [vmem:[#allocation2 + $0x70] sm:$0xff] %v355
    %380 = vst [vmem:[#allocation2 + $0x78] sm:$0xff] %v356
    %381 = vst [vmem:[#allocation2 + $0x80] sm:$0xff] %v357
    %382 = vst [vmem:[#allocation2 + $0x88] sm:$0xff] %v358
    %383 = vst [vmem:[#allocation2 + $0x90] sm:$0xff] %v359
    %384 = vst [vmem:[#allocation2 + $0x98] sm:$0xff] %v360
    %385 = vst [vmem:[#allocation2 + $0xa0] sm:$0xff] %v361
    %386 = vst [vmem:[#allocation2 + $0xa8] sm:$0xff] %v362
    %387 = vst [vmem:[#allocation2 + $0xb0] sm:$0xff] %v363
    %388 = vst [vmem:[#allocation2 + $0xb8] sm:$0xff] %v364
    %v389 = vld [vmem:[#allocation3] sm:$0xff]
    %v390 = vld [vmem:[#allocation3 + $0x8] sm:$0xff]
    %v391 = vld [vmem:[#allocation3 + $0x10] sm:$0xff]
    %v392 = vld [vmem:[#allocation3 + $0x18] sm:$0xff]
    %v393 = vld [vmem:[#allocation3 + $0x20] sm:$0xff]
    %v394 = vld [vmem:[#allocation3 + $0x28] sm:$0xff]
    %v395 = vld [vmem:[#allocation3 + $0x30] sm:$0xff]
    %v396 = vld [vmem:[#allocation3 + $0x38] sm:$0xff]
    %v397 = vld [vmem:[#allocation3 + $0x40] sm:$0xff]
    %v398 = vld [vmem:[#allocation3 + $0x48] sm:$0xff]
    %v399 = vld [vmem:[#allocation3 + $0x50] sm:$0xff]
    %v400 = vld [vmem:[#allocation3 + $0x58] sm:$0xff]
    %v401 = vld [vmem:[#allocation3 + $0x60] sm:$0xff]
    %v402 = vld [vmem:[#allocation3 + $0x68] sm:$0xff]
    %v403 = vld [vmem:[#allocation3 + $0x70] sm:$0xff]
    %v404 = vld [vmem:[#allocation3 + $0x78] sm:$0xff]
    %v405 = vld [vmem:[#allocation3 + $0x80] sm:$0xff]
    %v406 = vld [vmem:[#allocation3 + $0x88] sm:$0xff]
    %v407 = vld [vmem:[#allocation3 + $0x90] sm:$0xff]
    %v408 = vld [vmem:[#allocation3 + $0x98] sm:$0xff]
    %v409 = vld [vmem:[#allocation3 + $0xa0] sm:$0xff]
    %v410 = vld [vmem:[#allocation3 + $0xa8] sm:$0xff]
    %v411 = vld [vmem:[#allocation3 + $0xb0] sm:$0xff]
    %v412 = vld [vmem:[#allocation3 + $0xb8] sm:$0xff]
    %v413 = vld [vmem:[#allocation3 + $0xc0] sm:$0xff]
    %v414 = vld [vmem:[#allocation3 + $0xc8] sm:$0xff]
    %v415 = vld [vmem:[#allocation3 + $0xd0] sm:$0xff]
    %v416 = vld [vmem:[#allocation3 + $0xd8] sm:$0xff]
    %v417 = vld [vmem:[#allocation3 + $0xe0] sm:$0xff]
    %v418 = vld [vmem:[#allocation3 + $0xe8] sm:$0xff]
    %v419 = vld [vmem:[#allocation3 + $0xf0] sm:$0xff]
    %v420 = vld [vmem:[#allocation3 + $0xf8] sm:$0xff]
    %v421 = vld [vmem:[#allocation3 + $0x100] sm:$0xff]
    %v422 = vld [vmem:[#allocation3 + $0x108] sm:$0xff]
    %v423 = vld [vmem:[#allocation3 + $0x110] sm:$0xff]
    %v424 = vld [vmem:[#allocation3 + $0x118] sm:$0xff]
    %v425 = vld [vmem:[#allocation3 + $0x120] sm:$0xff]
    %v426 = vld [vmem:[#allocation3 + $0x128] sm:$0xff]
    %v427 = vld [vmem:[#allocation3 + $0x130] sm:$0xff]
    %v428 = vld [vmem:[#allocation3 + $0x138] sm:$0xff]
    %v429 = vld [vmem:[#allocation3 + $0x140] sm:$0xff]
    %v430 = vld [vmem:[#allocation3 + $0x148] sm:$0xff]
    %v431 = vld [vmem:[#allocation3 + $0x150] sm:$0xff]
    %v432 = vld [vmem:[#allocation3 + $0x158] sm:$0xff]
    %v433 = vld [vmem:[#allocation3 + $0x160] sm:$0xff]
    %v434 = vld [vmem:[#allocation3 + $0x168] sm:$0xff]
    %v435 = vld [vmem:[#allocation3 + $0x170] sm:$0xff]
    %v436 = vld [vmem:[#allocation3 + $0x178] sm:$0xff]
    %v437 = vld [vmem:[%s5] sm:$0x1]
    %v439 = vlaneseq
    %v440 = vshrl.u32 %v439, 7
    %v441 = vsub.s32 0, %v440
    %v442 = vrot.slane %v437, %v441
    %v444 = vld [vmem:[%s0] sm:$0xff]
    %v445 = vld [vmem:[#allocation2] sm:$0xff]
    %v446 = vld [vmem:[#allocation2 + $0x8] sm:$0xff]
    %v447 = vld [vmem:[#allocation2 + $0x10] sm:$0xff]
    %448 = vmatprep.subr.mxu0 %v390
    %449 = vmatpush1.msra.mxu0 %v389
    %450 = vmatprep.subr.mxu0 %v393
    %451 = vmatpush1.msra.mxu0 %v392
    %452 = vmatprep.subr.mxu0 %v396
    %453 = vmatpush1.msra.mxu0 %v395
    %454 = vmatprep.subr.mxu0 %v399
    %455 = vmatpush1.msra.mxu0 %v398
    %456 = vmatprep.subr.mxu0 %v402
    %457 = vmatpush1.msra.mxu0 %v401
    %458 = vmatprep.subr.mxu0 %v405
    %459 = vmatpush1.msra.mxu0 %v404
    %460 = vmatprep.subr.mxu0 %v408
    %461 = vmatpush1.msra.mxu0 %v407
    %462 = vmatprep.subr.mxu0 %v411
    %463 = vmatpush1.msra.mxu0 %v410
    %464 = vmatprep.subr.mxu0 %v414
    %465 = vmatpush1.msra.mxu0 %v413
    %466 = vmatprep.subr.mxu0 %v417
    %467 = vmatpush1.msra.mxu0 %v416
    %468 = vmatprep.subr.mxu0 %v420
    %469 = vmatpush1.msra.mxu0 %v419
    %470 = vmatprep.subr.mxu0 %v423
    %471 = vmatpush1.msra.mxu0 %v422
    %472 = vmatprep.subr.mxu0 %v426
    %473 = vmatpush1.msra.mxu0 %v425
    %474 = vmatprep.subr.mxu0 %v429
    %475 = vmatpush1.msra.mxu0 %v428
    %476 = vmatprep.subr.mxu0 %v432
    %477 = vmatpush1.msra.mxu0 %v431
    %478 = vmatprep.subr.mxu0 %v435
    %479 = vmatpush1.msra.mxu0 %v434
    %480 = vmatprep.subr.mxu0 0.0
    %481 = vmatpush1.msra.mxu0 0.0
    %482 = vmatprep.subr.mxu0 0.0
    %483 = vmatpush1.msra.mxu0 0.0
    %484 = vmatprep.subr.mxu0 0.0
    %485 = vmatpush1.msra.mxu0 0.0
    %486 = vmatprep.subr.mxu0 0.0
    %487 = vmatpush1.msra.mxu0 0.0
    %488 = vmatprep.subr.mxu0 0.0
    %489 = vmatpush1.msra.mxu0 0.0
    %490 = vmatprep.subr.mxu0 0.0
    %491 = vmatpush1.msra.mxu0 0.0
    %492 = vmatprep.subr.mxu0 0.0
    %493 = vmatpush1.msra.mxu0 0.0
    %494 = vmatprep.subr.mxu0 0.0
    %495 = vmatpush1.msra.mxu0 0.0
    %496 = vmatprep.subr.mxu0 0.0
    %497 = vmatpush1.msra.mxu0 0.0
    %498 = vmatprep.subr.mxu0 0.0
    %499 = vmatpush1.msra.mxu0 0.0
    %500 = vmatprep.subr.mxu0 0.0
    %501 = vmatpush1.msra.mxu0 0.0
    %502 = vmatprep.subr.mxu0 0.0
    %503 = vmatpush1.msra.mxu0 0.0
    %504 = vmatprep.subr.mxu0 0.0
    %505 = vmatpush1.msra.mxu0 0.0
    %506 = vmatprep.subr.mxu0 0.0
    %507 = vmatpush1.msra.mxu0 0.0
    %508 = vmatprep.subr.mxu0 0.0
    %509 = vmatpush1.msra.mxu0 0.0
    %510 = vmatprep.subr.mxu0 0.0
    %511 = vmatpush1.msra.mxu0 0.0
    %512 = vmatprep.mubr.f32.mxu0 0.0
    %513 = vmatmul.mubr.f32.gmra.mrb[0].mxu0 0.0
    %v514 = vpop.f32.mrb[0].mxu0
    %v515 = vadd.f32 0.0, %v514
    %v516 = vpop.f32.mrb[0].mxu0
    %v517 = vadd.f32 0.0, %v516
    %518 = vdwg.mxu0
    %519 = vmatprep.subr.mxu0 0.0
    %520 = vmatpush1.msra.mxu0 %v391
    %521 = vmatprep.subr.mxu0 0.0
    %522 = vmatpush1.msra.mxu0 %v394
    %523 = vmatprep.subr.mxu0 0.0
    %524 = vmatpush1.msra.mxu0 %v397
    %525 = vmatprep.subr.mxu0 0.0
    %526 = vmatpush1.msra.mxu0 %v400
    %527 = vmatprep.subr.mxu0 0.0
    %528 = vmatpush1.msra.mxu0 %v403
    %529 = vmatprep.subr.mxu0 0.0
    %530 = vmatpush1.msra.mxu0 %v406
    %531 = vmatprep.subr.mxu0 0.0
    %532 = vmatpush1.msra.mxu0 %v409
    %533 = vmatprep.subr.mxu0 0.0
    %534 = vmatpush1.msra.mxu0 %v412
    %535 = vmatprep.subr.mxu0 0.0
    %536 = vmatpush1.msra.mxu0 %v415
    %537 = vmatprep.subr.mxu0 0.0
    %538 = vmatpush1.msra.mxu0 %v418
    %539 = vmatprep.subr.mxu0 0.0
    %540 = vmatpush1.msra.mxu0 %v421
    %541 = vmatprep.subr.mxu0 0.0
    %542 = vmatpush1.msra.mxu0 %v424
    %543 = vmatprep.subr.mxu0 0.0
    %544 = vmatpush1.msra.mxu0 %v427
    %545 = vmatprep.subr.mxu0 0.0
    %546 = vmatpush1.msra.mxu0 %v430
    %547 = vmatprep.subr.mxu0 0.0
    %548 = vmatpush1.msra.mxu0 %v433
    %549 = vmatprep.subr.mxu0 0.0
    %550 = vmatpush1.msra.mxu0 %v436
    %551 = vmatprep.subr.mxu0 0.0
    %552 = vmatpush1.msra.mxu0 0.0
    %553 = vmatprep.subr.mxu0 0.0
    %554 = vmatpush1.msra.mxu0 0.0
    %555 = vmatprep.subr.mxu0 0.0
    %556 = vmatpush1.msra.mxu0 0.0
    %557 = vmatprep.subr.mxu0 0.0
    %558 = vmatpush1.msra.mxu0 0.0
    %559 = vmatprep.subr.mxu0 0.0
    %560 = vmatpush1.msra.mxu0 0.0
    %561 = vmatprep.subr.mxu0 0.0
    %562 = vmatpush1.msra.mxu0 0.0
    %563 = vmatprep.subr.mxu0 0.0
    %564 = vmatpush1.msra.mxu0 0.0
    %565 = vmatprep.subr.mxu0 0.0
    %566 = vmatpush1.msra.mxu0 0.0
    %567 = vmatprep.subr.mxu0 0.0
    %568 = vmatpush1.msra.mxu0 0.0
    %569 = vmatprep.subr.mxu0 0.0
    %570 = vmatpush1.msra.mxu0 0.0
    %571 = vmatprep.subr.mxu0 0.0
    %572 = vmatpush1.msra.mxu0 0.0
    %573 = vmatprep.subr.mxu0 0.0
    %574 = vmatpush1.msra.mxu0 0.0
    %575 = vmatprep.subr.mxu0 0.0
    %576 = vmatpush1.msra.mxu0 0.0
    %577 = vmatprep.subr.mxu0 0.0
    %578 = vmatpush1.msra.mxu0 0.0
    %579 = vmatprep.subr.mxu0 0.0
    %580 = vmatpush1.msra.mxu0 0.0
    %581 = vmatprep.subr.mxu0 0.0
    %582 = vmatpush1.msra.mxu0 0.0
    %583 = vmatprep.mubr.f32.mxu0 0.0
    %584 = vmatmul.mubr.f32.gmra.mrb[0].mxu0 0.0
    %v585 = vpop.f32.mrb[0].mxu0
    %v586 = vadd.f32 0.0, %v585
    %v587 = vpop.f32.mrb[0].mxu0
    %588 = vdwg.mxu0
    %v589 = vadd.f32 %v445, %v515
    %v590 = vxor.u32 %v589, 2147483648
    %v591 = vmul.f32 %v590, 1.442695
    %v592 = vpow.pop %v591
    %v593 = vadd.f32 %v592, 1.0
    %v594 = vrcp.pop %v593
    %v595 = vmul.f32 1.0, %v594
    %v596 = vadd.f32 %v446, %v517
    %v597 = vxor.u32 %v596, 2147483648
    %v598 = vmul.f32 %v597, 1.442695
    %v599 = vpow.pop %v598
    %v600 = vadd.f32 %v599, 1.0
    %v601 = vrcp.pop %v600
    %v602 = vmul.f32 1.0, %v601
    %v603 = vadd.f32 %v586, %v442
    %v604 = vmul.f32 %v595, %v603
    %v605 = vadd.f32 %v447, %v604
    %v606 = vtanh.pop %v605
    %v607 = vsub.f32 0.0, %v606
    %v608 = vmul.f32 %v602, %v607
    %v609 = vadd.f32 %v606, %v608
    %vm610 = vcmp.gt.s32.totalorder %v444, 0
    %v611 = vsel %vm610, 1, 0
    %612 = vset.pattern.permute.xlu0 0
    %613 = vperm.xlu0 %612, %v611
    %v614 = vpop.permute.xlu0 %613
    %vm615 = vcmp.eq.s32.totalorder %v614, 1
    %v616 = vsel %vm615, %v609, 0.0
    %s617 = scalar_lea.vmem [#allocation2], 24
    %v618 = vld [vmem:[%s617] sm:$0xff]
    %v619 = vld [vmem:[%s617 + $0x8] sm:$0xff]
    %v620 = vld [vmem:[%s617 + $0x10] sm:$0xff]
    %621 = vmatprep.subr.mxu0 %v390
    %622 = vmatpush1.msra.mxu0 %v389
    %623 = vmatprep.subr.mxu0 %v393
    %624 = vmatpush1.msra.mxu0 %v392
    %625 = vmatprep.subr.mxu0 %v396
    %626 = vmatpush1.msra.mxu0 %v395
    %627 = vmatprep.subr.mxu0 %v399
    %628 = vmatpush1.msra.mxu0 %v398
    %629 = vmatprep.subr.mxu0 %v402
    %630 = vmatpush1.msra.mxu0 %v401
    %631 = vmatprep.subr.mxu0 %v405
    %632 = vmatpush1.msra.mxu0 %v404
    %633 = vmatprep.subr.mxu0 %v408
    %634 = vmatpush1.msra.mxu0 %v407
    %635 = vmatprep.subr.mxu0 %v411
    %636 = vmatpush1.msra.mxu0 %v410
    %637 = vmatprep.subr.mxu0 %v414
    %638 = vmatpush1.msra.mxu0 %v413
    %639 = vmatprep.subr.mxu0 %v417
    %640 = vmatpush1.msra.mxu0 %v416
    %641 = vmatprep.subr.mxu0 %v420
    %642 = vmatpush1.msra.mxu0 %v419
    %643 = vmatprep.subr.mxu0 %v423
    %644 = vmatpush1.msra.mxu0 %v422
    %645 = vmatprep.subr.mxu0 %v426
    %646 = vmatpush1.msra.mxu0 %v425
    %647 = vmatprep.subr.mxu0 %v429
    %648 = vmatpush1.msra.mxu0 %v428
    %649 = vmatprep.subr.mxu0 %v432
    %650 = vmatpush1.msra.mxu0 %v431
    %651 = vmatprep.subr.mxu0 %v435
    %652 = vmatpush1.msra.mxu0 %v434
    %653 = vmatprep.subr.mxu0 0.0
    %654 = vmatpush1.msra.mxu0 0.0
    %655 = vmatprep.subr.mxu0 0.0
    %656 = vmatpush1.msra.mxu0 0.0
    %657 = vmatprep.subr.mxu0 0.0
    %658 = vmatpush1.msra.mxu0 0.0
    %659 = vmatprep.subr.mxu0 0.0
    %660 = vmatpush1.msra.mxu0 0.0
    %661 = vmatprep.subr.mxu0 0.0
    %662 = vmatpush1.msra.mxu0 0.0
    %663 = vmatprep.subr.mxu0 0.0
    %664 = vmatpush1.msra.mxu0 0.0
    %665 = vmatprep.subr.mxu0 0.0
    %666 = vmatpush1.msra.mxu0 0.0
    %667 = vmatprep.subr.mxu0 0.0
    %668 = vmatpush1.msra.mxu0 0.0
    %669 = vmatprep.subr.mxu0 0.0
    %670 = vmatpush1.msra.mxu0 0.0
    %671 = vmatprep.subr.mxu0 0.0
    %672 = vmatpush1.msra.mxu0 0.0
    %673 = vmatprep.subr.mxu0 0.0
    %674 = vmatpush1.msra.mxu0 0.0
    %675 = vmatprep.subr.mxu0 0.0
    %676 = vmatpush1.msra.mxu0 0.0
    %677 = vmatprep.subr.mxu0 0.0
    %678 = vmatpush1.msra.mxu0 0.0
    %679 = vmatprep.subr.mxu0 0.0
    %680 = vmatpush1.msra.mxu0 0.0
    %681 = vmatprep.subr.mxu0 0.0
    %682 = vmatpush1.msra.mxu0 0.0
    %683 = vmatprep.subr.mxu0 0.0
    %684 = vmatpush1.msra.mxu0 0.0
    %685 = vmatprep.mubr.f32.mxu0 0.0
    %686 = vmatmul.mubr.f32.gmra.mrb[0].mxu0 %v616
    %v687 = vpop.f32.mrb[0].mxu0
    %v688 = vadd.f32 0.0, %v687
    %v689 = vpop.f32.mrb[0].mxu0
    %v690 = vadd.f32 0.0, %v689
    %691 = vdwg.mxu0
    %692 = vmatprep.subr.mxu0 0.0
    %693 = vmatpush1.msra.mxu0 %v391
    %694 = vmatprep.subr.mxu0 0.0
    %695 = vmatpush1.msra.mxu0 %v394
    %696 = vmatprep.subr.mxu0 0.0
    %697 = vmatpush1.msra.mxu0 %v397
    %698 = vmatprep.subr.mxu0 0.0
    %699 = vmatpush1.msra.mxu0 %v400
    %700 = vmatprep.subr.mxu0 0.0
    %701 = vmatpush1.msra.mxu0 %v403
    %702 = vmatprep.subr.mxu0 0.0
    %703 = vmatpush1.msra.mxu0 %v406
    %704 = vmatprep.subr.mxu0 0.0
    %705 = vmatpush1.msra.mxu0 %v409
    %706 = vmatprep.subr.mxu0 0.0
    %707 = vmatpush1.msra.mxu0 %v412
    %708 = vmatprep.subr.mxu0 0.0
    %709 = vmatpush1.msra.mxu0 %v415
    %710 = vmatprep.subr.mxu0 0.0
    %711 = vmatpush1.msra.mxu0 %v418
    %712 = vmatprep.subr.mxu0 0.0
    %713 = vmatpush1.msra.mxu0 %v421
    %714 = vmatprep.subr.mxu0 0.0
    %715 = vmatpush1.msra.mxu0 %v424
    %716 = vmatprep.subr.mxu0 0.0
    %717 = vmatpush1.msra.mxu0 %v427
    %718 = vmatprep.subr.mxu0 0.0
    %719 = vmatpush1.msra.mxu0 %v430
    %720 = vmatprep.subr.mxu0 0.0
    %721 = vmatpush1.msra.mxu0 %v433
    %722 = vmatprep.subr.mxu0 0.0
    %723 = vmatpush1.msra.mxu0 %v436
    %724 = vmatprep.subr.mxu0 0.0
    %725 = vmatpush1.msra.mxu0 0.0
    %726 = vmatprep.subr.mxu0 0.0
    %727 = vmatpush1.msra.mxu0 0.0
    %728 = vmatprep.subr.mxu0 0.0
    %729 = vmatpush1.msra.mxu0 0.0
    %730 = vmatprep.subr.mxu0 0.0
    %731 = vmatpush1.msra.mxu0 0.0
    %732 = vmatprep.subr.mxu0 0.0
    %733 = vmatpush1.msra.mxu0 0.0
    %734 = vmatprep.subr.mxu0 0.0
    %735 = vmatpush1.msra.mxu0 0.0
    %736 = vmatprep.subr.mxu0 0.0
    %737 = vmatpush1.msra.mxu0 0.0
    %738 = vmatprep.subr.mxu0 0.0
    %739 = vmatpush1.msra.mxu0 0.0
    %740 = vmatprep.subr.mxu0 0.0
    %741 = vmatpush1.msra.mxu0 0.0
    %742 = vmatprep.subr.mxu0 0.0
    %743 = vmatpush1.msra.mxu0 0.0
    %744 = vmatprep.subr.mxu0 0.0
    %745 = vmatpush1.msra.mxu0 0.0
    %746 = vmatprep.subr.mxu0 0.0
    %747 = vmatpush1.msra.mxu0 0.0
    %748 = vmatprep.subr.mxu0 0.0
    %749 = vmatpush1.msra.mxu0 0.0
    %750 = vmatprep.subr.mxu0 0.0
    %751 = vmatpush1.msra.mxu0 0.0
    %752 = vmatprep.subr.mxu0 0.0
    %753 = vmatpush1.msra.mxu0 0.0
    %754 = vmatprep.subr.mxu0 0.0
    %755 = vmatpush1.msra.mxu0 0.0
    %756 = vmatprep.mubr.f32.mxu0 0.0
    %757 = vmatmul.mubr.f32.gmra.mrb[0].mxu0 %v616
    %v758 = vpop.f32.mrb[0].mxu0
    %v759 = vadd.f32 0.0, %v758
    %v760 = vpop.f32.mrb[0].mxu0
    %761 = vdwg.mxu0
    %v762 = vadd.f32 %v618, %v688
    %v763 = vxor.u32 %v762, 2147483648
    %v764 = vmul.f32 %v763, 1.442695
    %v765 = vpow.pop %v764
    %v766 = vadd.f32 %v765, 1.0
    %v767 = vrcp.pop %v766
    %v768 = vmul.f32 1.0, %v767
    %v769 = vadd.f32 %v619, %v690
    %v770 = vxor.u32 %v769, 2147483648
    %v771 = vmul.f32 %v770, 1.442695
    %v772 = vpow.pop %v771
    %v773 = vadd.f32 %v772, 1.0
    %v774 = vrcp.pop %v773
    %v775 = vmul.f32 1.0, %v774
    %v776 = vadd.f32 %v759, %v442
    %v777 = vmul.f32 %v768, %v776
    %v778 = vadd.f32 %v620, %v777
    %v779 = vtanh.pop %v778
    %v780 = vsub.f32 %v616, %v779
    %v781 = vmul.f32 %v775, %v780
    %v782 = vadd.f32 %v779, %v781
    %vm783 = vcmp.gt.s32.totalorder %v444, 1
    %v784 = vsel %vm783, 1, 0
    %785 = vset.pattern.permute.xlu0 0
    %786 = vperm.xlu0 %785, %v784
    %v787 = vpop.permute.xlu0 %786
    %vm788 = vcmp.eq.s32.totalorder %v787, 1
    %v789 = vsel %vm788, %v782, %v616
    %s790 = scalar_lea.vmem [#allocation2], 48
    %v791 = vld [vmem:[%s790] sm:$0xff]
    %v792 = vld [vmem:[%s790 + $0x8] sm:$0xff]
    %v793 = vld [vmem:[%s790 + $0x10] sm:$0xff]
    %794 = vmatprep.subr.mxu0 %v390
    %795 = vmatpush1.msra.mxu0 %v389
    %796 = vmatprep.subr.mxu0 %v393
    %797 = vmatpush1.msra.mxu0 %v392
    %798 = vmatprep.subr.mxu0 %v396
    %799 = vmatpush1.msra.mxu0 %v395
    %800 = vmatprep.subr.mxu0 %v399
    %801 = vmatpush1.msra.mxu0 %v398
    %802 = vmatprep.subr.mxu0 %v402
    %803 = vmatpush1.msra.mxu0 %v401
    %804 = vmatprep.subr.mxu0 %v405
    %805 = vmatpush1.msra.mxu0 %v404
    %806 = vmatprep.subr.mxu0 %v408
    %807 = vmatpush1.msra.mxu0 %v407
    %808 = vmatprep.subr.mxu0 %v411
    %809 = vmatpush1.msra.mxu0 %v410
    %810 = vmatprep.subr.mxu0 %v414
    %811 = vmatpush1.msra.mxu0 %v413
    %812 = vmatprep.subr.mxu0 %v417
    %813 = vmatpush1.msra.mxu0 %v416
    %814 = vmatprep.subr.mxu0 %v420
    %815 = vmatpush1.msra.mxu0 %v419
    %816 = vmatprep.subr.mxu0 %v423
    %817 = vmatpush1.msra.mxu0 %v422
    %818 = vmatprep.subr.mxu0 %v426
    %819 = vmatpush1.msra.mxu0 %v425
    %820 = vmatprep.subr.mxu0 %v429
    %821 = vmatpush1.msra.mxu0 %v428
    %822 = vmatprep.subr.mxu0 %v432
    %823 = vmatpush1.msra.mxu0 %v431
    %824 = vmatprep.subr.mxu0 %v435
    %825 = vmatpush1.msra.mxu0 %v434
    %826 = vmatprep.subr.mxu0 0.0
    %827 = vmatpush1.msra.mxu0 0.0
    %828 = vmatprep.subr.mxu0 0.0
    %829 = vmatpush1.msra.mxu0 0.0
    %830 = vmatprep.subr.mxu0 0.0
    %831 = vmatpush1.msra.mxu0 0.0
    %832 = vmatprep.subr.mxu0 0.0
    %833 = vmatpush1.msra.mxu0 0.0
    %834 = vmatprep.subr.mxu0 0.0
    %835 = vmatpush1.msra.mxu0 0.0
    %836 = vmatprep.subr.mxu0 0.0
    %837 = vmatpush1.msra.mxu0 0.0
    %838 = vmatprep.subr.mxu0 0.0
    %839 = vmatpush1.msra.mxu0 0.0
    %840 = vmatprep.subr.mxu0 0.0
    %841 = vmatpush1.msra.mxu0 0.0
    %842 = vmatprep.subr.mxu0 0.0
    %843 = vmatpush1.msra.mxu0 0.0
    %844 = vmatprep.subr.mxu0 0.0
    %845 = vmatpush1.msra.mxu0 0.0
    %846 = vmatprep.subr.mxu0 0.0
    %847 = vmatpush1.msra.mxu0 0.0
    %848 = vmatprep.subr.mxu0 0.0
    %849 = vmatpush1.msra.mxu0 0.0
    %850 = vmatprep.subr.mxu0 0.0
    %851 = vmatpush1.msra.mxu0 0.0
    %852 = vmatprep.subr.mxu0 0.0
    %853 = vmatpush1.msra.mxu0 0.0
    %854 = vmatprep.subr.mxu0 0.0
    %855 = vmatpush1.msra.mxu0 0.0
    %856 = vmatprep.subr.mxu0 0.0
    %857 = vmatpush1.msra.mxu0 0.0
    %858 = vmatprep.mubr.f32.mxu0 0.0
    %859 = vmatmul.mubr.f32.gmra.mrb[0].mxu0 %v789
    %v860 = vpop.f32.mrb[0].mxu0
    %v861 = vadd.f32 0.0, %v860
    %v862 = vpop.f32.mrb[0].mxu0
    %v863 = vadd.f32 0.0, %v862
    %864 = vdwg.mxu0
    %865 = vmatprep.subr.mxu0 0.0
    %866 = vmatpush1.msra.mxu0 %v391
    %867 = vmatprep.subr.mxu0 0.0
    %868 = vmatpush1.msra.mxu0 %v394
    %869 = vmatprep.subr.mxu0 0.0
    %870 = vmatpush1.msra.mxu0 %v397
    %871 = vmatprep.subr.mxu0 0.0
    %872 = vmatpush1.msra.mxu0 %v400
    %873 = vmatprep.subr.mxu0 0.0
    %874 = vmatpush1.msra.mxu0 %v403
    %875 = vmatprep.subr.mxu0 0.0
    %876 = vmatpush1.msra.mxu0 %v406
    %877 = vmatprep.subr.mxu0 0.0
    %878 = vmatpush1.msra.mxu0 %v409
    %879 = vmatprep.subr.mxu0 0.0
    %880 = vmatpush1.msra.mxu0 %v412
    %881 = vmatprep.subr.mxu0 0.0
    %882 = vmatpush1.msra.mxu0 %v415
    %883 = vmatprep.subr.mxu0 0.0
    %884 = vmatpush1.msra.mxu0 %v418
    %885 = vmatprep.subr.mxu0 0.0
    %886 = vmatpush1.msra.mxu0 %v421
    %887 = vmatprep.subr.mxu0 0.0
    %888 = vmatpush1.msra.mxu0 %v424
    %889 = vmatprep.subr.mxu0 0.0
    %890 = vmatpush1.msra.mxu0 %v427
    %891 = vmatprep.subr.mxu0 0.0
    %892 = vmatpush1.msra.mxu0 %v430
    %893 = vmatprep.subr.mxu0 0.0
    %894 = vmatpush1.msra.mxu0 %v433
    %895 = vmatprep.subr.mxu0 0.0
    %896 = vmatpush1.msra.mxu0 %v436
    %897 = vmatprep.subr.mxu0 0.0
    %898 = vmatpush1.msra.mxu0 0.0
    %899 = vmatprep.subr.mxu0 0.0
    %900 = vmatpush1.msra.mxu0 0.0
    %901 = vmatprep.subr.mxu0 0.0
    %902 = vmatpush1.msra.mxu0 0.0
    %903 = vmatprep.subr.mxu0 0.0
    %904 = vmatpush1.msra.mxu0 0.0
    %905 = vmatprep.subr.mxu0 0.0
    %906 = vmatpush1.msra.mxu0 0.0
    %907 = vmatprep.subr.mxu0 0.0
    %908 = vmatpush1.msra.mxu0 0.0
    %909 = vmatprep.subr.mxu0 0.0
    %910 = vmatpush1.msra.mxu0 0.0
    %911 = vmatprep.subr.mxu0 0.0
    %912 = vmatpush1.msra.mxu0 0.0
    %913 = vmatprep.subr.mxu0 0.0
    %914 = vmatpush1.msra.mxu0 0.0
    %915 = vmatprep.subr.mxu0 0.0
    %916 = vmatpush1.msra.mxu0 0.0
    %917 = vmatprep.subr.mxu0 0.0
    %918 = vmatpush1.msra.mxu0 0.0
    %919 = vmatprep.subr.mxu0 0.0
    %920 = vmatpush1.msra.mxu0 0.0
    %921 = vmatprep.subr.mxu0 0.0
    %922 = vmatpush1.msra.mxu0 0.0
    %923 = vmatprep.subr.mxu0 0.0
    %924 = vmatpush1.msra.mxu0 0.0
    %925 = vmatprep.subr.mxu0 0.0
    %926 = vmatpush1.msra.mxu0 0.0
    %927 = vmatprep.subr.mxu0 0.0
    %928 = vmatpush1.msra.mxu0 0.0
    %929 = vmatprep.mubr.f32.mxu0 0.0
    %930 = vmatmul.mubr.f32.gmra.mrb[0].mxu0 %v789
    %v931 = vpop.f32.mrb[0].mxu0
    %v932 = vadd.f32 0.0, %v931
    %v933 = vpop.f32.mrb[0].mxu0
    %934 = vdwg.mxu0
    %v935 = vadd.f32 %v791, %v861
    %v936 = vxor.u32 %v935, 2147483648
    %v937 = vmul.f32 %v936, 1.442695
    %v938 = vpow.pop %v937
    %v939 = vadd.f32 %v938, 1.0
    %v940 = vrcp.pop %v939
    %v941 = vmul.f32 1.0, %v940
    %v942 = vadd.f32 %v792, %v863
    %v943 = vxor.u32 %v942, 2147483648
    %v944 = vmul.f32 %v943, 1.442695
    %v945 = vpow.pop %v944
    %v946 = vadd.f32 %v945, 1.0
    %v947 = vrcp.pop %v946
    %v948 = vmul.f32 1.0, %v947
    %v949 = vadd.f32 %v932, %v442
    %v950 = vmul.f32 %v941, %v949
    %v951 = vadd.f32 %v793, %v950
    %v952 = vtanh.pop %v951
    %v953 = vsub.f32 %v789, %v952
    %v954 = vmul.f32 %v948, %v953
    %v955 = vadd.f32 %v952, %v954
    %vm956 = vcmp.gt.s32.totalorder %v444, 2
    %v957 = vsel %vm956, 1, 0
    %958 = vset.pattern.permute.xlu0 0
    %959 = vperm.xlu0 %958, %v957
    %v960 = vpop.permute.xlu0 %959
    %vm961 = vcmp.eq.s32.totalorder %v960, 1
    %v962 = vsel %vm961, %v955, %v789
    %s963 = scalar_lea.vmem [#allocation2], 72
    %v964 = vld [vmem:[%s963] sm:$0xff]
    %v965 = vld [vmem:[%s963 + $0x8] sm:$0xff]
    %v966 = vld [vmem:[%s963 + $0x10] sm:$0xff]
    %967 = vmatprep.subr.mxu0 %v390
    %968 = vmatpush1.msra.mxu0 %v389
    %969 = vmatprep.subr.mxu0 %v393
    %970 = vmatpush1.msra.mxu0 %v392
    %971 = vmatprep.subr.mxu0 %v396
    %972 = vmatpush1.msra.mxu0 %v395
    %973 = vmatprep.subr.mxu0 %v399
    %974 = vmatpush1.msra.mxu0 %v398
    %975 = vmatprep.subr.mxu0 %v402
    %976 = vmatpush1.msra.mxu0 %v401
    %977 = vmatprep.subr.mxu0 %v405
    %978 = vmatpush1.msra.mxu0 %v404
    %979 = vmatprep.subr.mxu0 %v408
    %980 = vmatpush1.msra.mxu0 %v407
    %981 = vmatprep.subr.mxu0 %v411
    %982 = vmatpush1.msra.mxu0 %v410
    %983 = vmatprep.subr.mxu0 %v414
    %984 = vmatpush1.msra.mxu0 %v413
    %985 = vmatprep.subr.mxu0 %v417
    %986 = vmatpush1.msra.mxu0 %v416
    %987 = vmatprep.subr.mxu0 %v420
    %988 = vmatpush1.msra.mxu0 %v419
    %989 = vmatprep.subr.mxu0 %v423
    %990 = vmatpush1.msra.mxu0 %v422
    %991 = vmatprep.subr.mxu0 %v426
    %992 = vmatpush1.msra.mxu0 %v425
    %993 = vmatprep.subr.mxu0 %v429
    %994 = vmatpush1.msra.mxu0 %v428
    %995 = vmatprep.subr.mxu0 %v432
    %996 = vmatpush1.msra.mxu0 %v431
    %997 = vmatprep.subr.mxu0 %v435
    %998 = vmatpush1.msra.mxu0 %v434
    %999 = vmatprep.subr.mxu0 0.0
    %1000 = vmatpush1.msra.mxu0 0.0
    %1001 = vmatprep.subr.mxu0 0.0
    %1002 = vmatpush1.msra.mxu0 0.0
    %1003 = vmatprep.subr.mxu0 0.0
    %1004 = vmatpush1.msra.mxu0 0.0
    %1005 = vmatprep.subr.mxu0 0.0
    %1006 = vmatpush1.msra.mxu0 0.0
    %1007 = vmatprep.subr.mxu0 0.0
    %1008 = vmatpush1.msra.mxu0 0.0
    %1009 = vmatprep.subr.mxu0 0.0
    %1010 = vmatpush1.msra.mxu0 0.0
    %1011 = vmatprep.subr.mxu0 0.0
    %1012 = vmatpush1.msra.mxu0 0.0
    %1013 = vmatprep.subr.mxu0 0.0
    %1014 = vmatpush1.msra.mxu0 0.0
    %1015 = vmatprep.subr.mxu0 0.0
    %1016 = vmatpush1.msra.mxu0 0.0
    %1017 = vmatprep.subr.mxu0 0.0
    %1018 = vmatpush1.msra.mxu0 0.0
    %1019 = vmatprep.subr.mxu0 0.0
    %1020 = vmatpush1.msra.mxu0 0.0
    %1021 = vmatprep.subr.mxu0 0.0
    %1022 = vmatpush1.msra.mxu0 0.0
    %1023 = vmatprep.subr.mxu0 0.0
    %1024 = vmatpush1.msra.mxu0 0.0
    %1025 = vmatprep.subr.mxu0 0.0
    %1026 = vmatpush1.msra.mxu0 0.0
    %1027 = vmatprep.subr.mxu0 0.0
    %1028 = vmatpush1.msra.mxu0 0.0
    %1029 = vmatprep.subr.mxu0 0.0
    %1030 = vmatpush1.msra.mxu0 0.0
    %1031 = vmatprep.mubr.f32.mxu0 0.0
    %1032 = vmatmul.mubr.f32.gmra.mrb[0].mxu0 %v962
    %v1033 = vpop.f32.mrb[0].mxu0
    %v1034 = vadd.f32 0.0, %v1033
    %v1035 = vpop.f32.mrb[0].mxu0
    %v1036 = vadd.f32 0.0, %v1035
    %1037 = vdwg.mxu0
    %1038 = vmatprep.subr.mxu0 0.0
    %1039 = vmatpush1.msra.mxu0 %v391
    %1040 = vmatprep.subr.mxu0 0.0
    %1041 = vmatpush1.msra.mxu0 %v394
    %1042 = vmatprep.subr.mxu0 0.0
    %1043 = vmatpush1.msra.mxu0 %v397
    %1044 = vmatprep.subr.mxu0 0.0
    %1045 = vmatpush1.msra.mxu0 %v400
    %1046 = vmatprep.subr.mxu0 0.0
    %1047 = vmatpush1.msra.mxu0 %v403
    %1048 = vmatprep.subr.mxu0 0.0
    %1049 = vmatpush1.msra.mxu0 %v406
    %1050 = vmatprep.subr.mxu0 0.0
    %1051 = vmatpush1.msra.mxu0 %v409
    %1052 = vmatprep.subr.mxu0 0.0
    %1053 = vmatpush1.msra.mxu0 %v412
    %1054 = vmatprep.subr.mxu0 0.0
    %1055 = vmatpush1.msra.mxu0 %v415
    %1056 = vmatprep.subr.mxu0 0.0
    %1057 = vmatpush1.msra.mxu0 %v418
    %1058 = vmatprep.subr.mxu0 0.0
    %1059 = vmatpush1.msra.mxu0 %v421
    %1060 = vmatprep.subr.mxu0 0.0
    %1061 = vmatpush1.msra.mxu0 %v424
    %1062 = vmatprep.subr.mxu0 0.0
    %1063 = vmatpush1.msra.mxu0 %v427
    %1064 = vmatprep.subr.mxu0 0.0
    %1065 = vmatpush1.msra.mxu0 %v430
    %1066 = vmatprep.subr.mxu0 0.0
    %1067 = vmatpush1.msra.mxu0 %v433
    %1068 = vmatprep.subr.mxu0 0.0
    %1069 = vmatpush1.msra.mxu0 %v436
    %1070 = vmatprep.subr.mxu0 0.0
    %1071 = vmatpush1.msra.mxu0 0.0
    %1072 = vmatprep.subr.mxu0 0.0
    %1073 = vmatpush1.msra.mxu0 0.0
    %1074 = vmatprep.subr.mxu0 0.0
    %1075 = vmatpush1.msra.mxu0 0.0
    %1076 = vmatprep.subr.mxu0 0.0
    %1077 = vmatpush1.msra.mxu0 0.0
    %1078 = vmatprep.subr.mxu0 0.0
    %1079 = vmatpush1.msra.mxu0 0.0
    %1080 = vmatprep.subr.mxu0 0.0
    %1081 = vmatpush1.msra.mxu0 0.0
    %1082 = vmatprep.subr.mxu0 0.0
    %1083 = vmatpush1.msra.mxu0 0.0
    %1084 = vmatprep.subr.mxu0 0.0
    %1085 = vmatpush1.msra.mxu0 0.0
    %1086 = vmatprep.subr.mxu0 0.0
    %1087 = vmatpush1.msra.mxu0 0.0
    %1088 = vmatprep.subr.mxu0 0.0
    %1089 = vmatpush1.msra.mxu0 0.0
    %1090 = vmatprep.subr.mxu0 0.0
    %1091 = vmatpush1.msra.mxu0 0.0
    %1092 = vmatprep.subr.mxu0 0.0
    %1093 = vmatpush1.msra.mxu0 0.0
    %1094 = vmatprep.subr.mxu0 0.0
    %1095 = vmatpush1.msra.mxu0 0.0
    %1096 = vmatprep.subr.mxu0 0.0
    %1097 = vmatpush1.msra.mxu0 0.0
    %1098 = vmatprep.subr.mxu0 0.0
    %1099 = vmatpush1.msra.mxu0 0.0
    %1100 = vmatprep.subr.mxu0 0.0
    %1101 = vmatpush1.msra.mxu0 0.0
    %1102 = vmatprep.mubr.f32.mxu0 0.0
    %1103 = vmatmul.mubr.f32.gmra.mrb[0].mxu0 %v962
    %v1104 = vpop.f32.mrb[0].mxu0
    %v1105 = vadd.f32 0.0, %v1104
    %v1106 = vpop.f32.mrb[0].mxu0
    %1107 = vdwg.mxu0
    %v1108 = vadd.f32 %v964, %v1034
    %v1109 = vxor.u32 %v1108, 2147483648
    %v1110 = vmul.f32 %v1109, 1.442695
    %v1111 = vpow.pop %v1110
    %v1112 = vadd.f32 %v1111, 1.0
    %v1113 = vrcp.pop %v1112
    %v1114 = vmul.f32 1.0, %v1113
    %v1115 = vadd.f32 %v965, %v1036
    %v1116 = vxor.u32 %v1115, 2147483648
    %v1117 = vmul.f32 %v1116, 1.442695
    %v1118 = vpow.pop %v1117
    %v1119 = vadd.f32 %v1118, 1.0
    %v1120 = vrcp.pop %v1119
    %v1121 = vmul.f32 1.0, %v1120
    %v1122 = vadd.f32 %v1105, %v442
    %v1123 = vmul.f32 %v1114, %v1122
    %v1124 = vadd.f32 %v966, %v1123
    %v1125 = vtanh.pop %v1124
    %v1126 = vsub.f32 %v962, %v1125
    %v1127 = vmul.f32 %v1121, %v1126
    %v1128 = vadd.f32 %v1125, %v1127
    %vm1129 = vcmp.gt.s32.totalorder %v444, 3
    %v1130 = vsel %vm1129, 1, 0
    %1131 = vset.pattern.permute.xlu0 0
    %1132 = vperm.xlu0 %1131, %v1130
    %v1133 = vpop.permute.xlu0 %1132
    %vm1134 = vcmp.eq.s32.totalorder %v1133, 1
    %v1135 = vsel %vm1134, %v1128, %v962
    %s1136 = scalar_lea.vmem [#allocation2], 96
    %v1137 = vld [vmem:[%s1136] sm:$0xff]
    %v1138 = vld [vmem:[%s1136 + $0x8] sm:$0xff]
    %v1139 = vld [vmem:[%s1136 + $0x10] sm:$0xff]
    %1140 = vmatprep.subr.mxu0 %v390
    %1141 = vmatpush1.msra.mxu0 %v389
    %1142 = vmatprep.subr.mxu0 %v393
    %1143 = vmatpush1.msra.mxu0 %v392
    %1144 = vmatprep.subr.mxu0 %v396
    %1145 = vmatpush1.msra.mxu0 %v395
    %1146 = vmatprep.subr.mxu0 %v399
    %1147 = vmatpush1.msra.mxu0 %v398
    %1148 = vmatprep.subr.mxu0 %v402
    %1149 = vmatpush1.msra.mxu0 %v401
    %1150 = vmatprep.subr.mxu0 %v405
    %1151 = vmatpush1.msra.mxu0 %v404
    %1152 = vmatprep.subr.mxu0 %v408
    %1153 = vmatpush1.msra.mxu0 %v407
    %1154 = vmatprep.subr.mxu0 %v411
    %1155 = vmatpush1.msra.mxu0 %v410
    %1156 = vmatprep.subr.mxu0 %v414
    %1157 = vmatpush1.msra.mxu0 %v413
    %1158 = vmatprep.subr.mxu0 %v417
    %1159 = vmatpush1.msra.mxu0 %v416
    %1160 = vmatprep.subr.mxu0 %v420
    %1161 = vmatpush1.msra.mxu0 %v419
    %1162 = vmatprep.subr.mxu0 %v423
    %1163 = vmatpush1.msra.mxu0 %v422
    %1164 = vmatprep.subr.mxu0 %v426
    %1165 = vmatpush1.msra.mxu0 %v425
    %1166 = vmatprep.subr.mxu0 %v429
    %1167 = vmatpush1.msra.mxu0 %v428
    %1168 = vmatprep.subr.mxu0 %v432
    %1169 = vmatpush1.msra.mxu0 %v431
    %1170 = vmatprep.subr.mxu0 %v435
    %1171 = vmatpush1.msra.mxu0 %v434
    %1172 = vmatprep.subr.mxu0 0.0
    %1173 = vmatpush1.msra.mxu0 0.0
    %1174 = vmatprep.subr.mxu0 0.0
    %1175 = vmatpush1.msra.mxu0 0.0
    %1176 = vmatprep.subr.mxu0 0.0
    %1177 = vmatpush1.msra.mxu0 0.0
    %1178 = vmatprep.subr.mxu0 0.0
    %1179 = vmatpush1.msra.mxu0 0.0
    %1180 = vmatprep.subr.mxu0 0.0
    %1181 = vmatpush1.msra.mxu0 0.0
    %1182 = vmatprep.subr.mxu0 0.0
    %1183 = vmatpush1.msra.mxu0 0.0
    %1184 = vmatprep.subr.mxu0 0.0
    %1185 = vmatpush1.msra.mxu0 0.0
    %1186 = vmatprep.subr.mxu0 0.0
    %1187 = vmatpush1.msra.mxu0 0.0
    %1188 = vmatprep.subr.mxu0 0.0
    %1189 = vmatpush1.msra.mxu0 0.0
    %1190 = vmatprep.subr.mxu0 0.0
    %1191 = vmatpush1.msra.mxu0 0.0
    %1192 = vmatprep.subr.mxu0 0.0
    %1193 = vmatpush1.msra.mxu0 0.0
    %1194 = vmatprep.subr.mxu0 0.0
    %1195 = vmatpush1.msra.mxu0 0.0
    %1196 = vmatprep.subr.mxu0 0.0
    %1197 = vmatpush1.msra.mxu0 0.0
    %1198 = vmatprep.subr.mxu0 0.0
    %1199 = vmatpush1.msra.mxu0 0.0
    %1200 = vmatprep.subr.mxu0 0.0
    %1201 = vmatpush1.msra.mxu0 0.0
    %1202 = vmatprep.subr.mxu0 0.0
    %1203 = vmatpush1.msra.mxu0 0.0
    %1204 = vmatprep.mubr.f32.mxu0 0.0
    %1205 = vmatmul.mubr.f32.gmra.mrb[0].mxu0 %v1135
    %v1206 = vpop.f32.mrb[0].mxu0
    %v1207 = vadd.f32 0.0, %v1206
    %v1208 = vpop.f32.mrb[0].mxu0
    %v1209 = vadd.f32 0.0, %v1208
    %1210 = vdwg.mxu0
    %1211 = vmatprep.subr.mxu0 0.0
    %1212 = vmatpush1.msra.mxu0 %v391
    %1213 = vmatprep.subr.mxu0 0.0
    %1214 = vmatpush1.msra.mxu0 %v394
    %1215 = vmatprep.subr.mxu0 0.0
    %1216 = vmatpush1.msra.mxu0 %v397
    %1217 = vmatprep.subr.mxu0 0.0
    %1218 = vmatpush1.msra.mxu0 %v400
    %1219 = vmatprep.subr.mxu0 0.0
    %1220 = vmatpush1.msra.mxu0 %v403
    %1221 = vmatprep.subr.mxu0 0.0
    %1222 = vmatpush1.msra.mxu0 %v406
    %1223 = vmatprep.subr.mxu0 0.0
    %1224 = vmatpush1.msra.mxu0 %v409
    %1225 = vmatprep.subr.mxu0 0.0
    %1226 = vmatpush1.msra.mxu0 %v412
    %1227 = vmatprep.subr.mxu0 0.0
    %1228 = vmatpush1.msra.mxu0 %v415
    %1229 = vmatprep.subr.mxu0 0.0
    %1230 = vmatpush1.msra.mxu0 %v418
    %1231 = vmatprep.subr.mxu0 0.0
    %1232 = vmatpush1.msra.mxu0 %v421
    %1233 = vmatprep.subr.mxu0 0.0
    %1234 = vmatpush1.msra.mxu0 %v424
    %1235 = vmatprep.subr.mxu0 0.0
    %1236 = vmatpush1.msra.mxu0 %v427
    %1237 = vmatprep.subr.mxu0 0.0
    %1238 = vmatpush1.msra.mxu0 %v430
    %1239 = vmatprep.subr.mxu0 0.0
    %1240 = vmatpush1.msra.mxu0 %v433
    %1241 = vmatprep.subr.mxu0 0.0
    %1242 = vmatpush1.msra.mxu0 %v436
    %1243 = vmatprep.subr.mxu0 0.0
    %1244 = vmatpush1.msra.mxu0 0.0
    %1245 = vmatprep.subr.mxu0 0.0
    %1246 = vmatpush1.msra.mxu0 0.0
    %1247 = vmatprep.subr.mxu0 0.0
    %1248 = vmatpush1.msra.mxu0 0.0
    %1249 = vmatprep.subr.mxu0 0.0
    %1250 = vmatpush1.msra.mxu0 0.0
    %1251 = vmatprep.subr.mxu0 0.0
    %1252 = vmatpush1.msra.mxu0 0.0
    %1253 = vmatprep.subr.mxu0 0.0
    %1254 = vmatpush1.msra.mxu0 0.0
    %1255 = vmatprep.subr.mxu0 0.0
    %1256 = vmatpush1.msra.mxu0 0.0
    %1257 = vmatprep.subr.mxu0 0.0
    %1258 = vmatpush1.msra.mxu0 0.0
    %1259 = vmatprep.subr.mxu0 0.0
    %1260 = vmatpush1.msra.mxu0 0.0
    %1261 = vmatprep.subr.mxu0 0.0
    %1262 = vmatpush1.msra.mxu0 0.0
    %1263 = vmatprep.subr.mxu0 0.0
    %1264 = vmatpush1.msra.mxu0 0.0
    %1265 = vmatprep.subr.mxu0 0.0
    %1266 = vmatpush1.msra.mxu0 0.0
    %1267 = vmatprep.subr.mxu0 0.0
    %1268 = vmatpush1.msra.mxu0 0.0
    %1269 = vmatprep.subr.mxu0 0.0
    %1270 = vmatpush1.msra.mxu0 0.0
    %1271 = vmatprep.subr.mxu0 0.0
    %1272 = vmatpush1.msra.mxu0 0.0
    %1273 = vmatprep.subr.mxu0 0.0
    %1274 = vmatpush1.msra.mxu0 0.0
    %1275 = vmatprep.mubr.f32.mxu0 0.0
    %1276 = vmatmul.mubr.f32.gmra.mrb[0].mxu0 %v1135
    %v1277 = vpop.f32.mrb[0].mxu0
    %v1278 = vadd.f32 0.0, %v1277
    %v1279 = vpop.f32.mrb[0].mxu0
    %1280 = vdwg.mxu0
    %v1281 = vadd.f32 %v1137, %v1207
    %v1282 = vxor.u32 %v1281, 2147483648
    %v1283 = vmul.f32 %v1282, 1.442695
    %v1284 = vpow.pop %v1283
    %v1285 = vadd.f32 %v1284, 1.0
    %v1286 = vrcp.pop %v1285
    %v1287 = vmul.f32 1.0, %v1286
    %v1288 = vadd.f32 %v1138, %v1209
    %v1289 = vxor.u32 %v1288, 2147483648
    %v1290 = vmul.f32 %v1289, 1.442695
    %v1291 = vpow.pop %v1290
    %v1292 = vadd.f32 %v1291, 1.0
    %v1293 = vrcp.pop %v1292
    %v1294 = vmul.f32 1.0, %v1293
    %v1295 = vadd.f32 %v1278, %v442
    %v1296 = vmul.f32 %v1287, %v1295
    %v1297 = vadd.f32 %v1139, %v1296
    %v1298 = vtanh.pop %v1297
    %v1299 = vsub.f32 %v1135, %v1298
    %v1300 = vmul.f32 %v1294, %v1299
    %v1301 = vadd.f32 %v1298, %v1300
    %vm1302 = vcmp.gt.s32.totalorder %v444, 4
    %v1303 = vsel %vm1302, 1, 0
    %1304 = vset.pattern.permute.xlu0 0
    %1305 = vperm.xlu0 %1304, %v1303
    %v1306 = vpop.permute.xlu0 %1305
    %vm1307 = vcmp.eq.s32.totalorder %v1306, 1
    %v1308 = vsel %vm1307, %v1301, %v1135
    %s1309 = scalar_lea.vmem [#allocation2], 120
    %v1310 = vld [vmem:[%s1309] sm:$0xff]
    %v1311 = vld [vmem:[%s1309 + $0x8] sm:$0xff]
    %v1312 = vld [vmem:[%s1309 + $0x10] sm:$0xff]
    %1313 = vmatprep.subr.mxu0 %v390
    %1314 = vmatpush1.msra.mxu0 %v389
    %1315 = vmatprep.subr.mxu0 %v393
    %1316 = vmatpush1.msra.mxu0 %v392
    %1317 = vmatprep.subr.mxu0 %v396
    %1318 = vmatpush1.msra.mxu0 %v395
    %1319 = vmatprep.subr.mxu0 %v399
    %1320 = vmatpush1.msra.mxu0 %v398
    %1321 = vmatprep.subr.mxu0 %v402
    %1322 = vmatpush1.msra.mxu0 %v401
    %1323 = vmatprep.subr.mxu0 %v405
    %1324 = vmatpush1.msra.mxu0 %v404
    %1325 = vmatprep.subr.mxu0 %v408
    %1326 = vmatpush1.msra.mxu0 %v407
    %1327 = vmatprep.subr.mxu0 %v411
    %1328 = vmatpush1.msra.mxu0 %v410
    %1329 = vmatprep.subr.mxu0 %v414
    %1330 = vmatpush1.msra.mxu0 %v413
    %1331 = vmatprep.subr.mxu0 %v417
    %1332 = vmatpush1.msra.mxu0 %v416
    %1333 = vmatprep.subr.mxu0 %v420
    %1334 = vmatpush1.msra.mxu0 %v419
    %1335 = vmatprep.subr.mxu0 %v423
    %1336 = vmatpush1.msra.mxu0 %v422
    %1337 = vmatprep.subr.mxu0 %v426
    %1338 = vmatpush1.msra.mxu0 %v425
    %1339 = vmatprep.subr.mxu0 %v429
    %1340 = vmatpush1.msra.mxu0 %v428
    %1341 = vmatprep.subr.mxu0 %v432
    %1342 = vmatpush1.msra.mxu0 %v431
    %1343 = vmatprep.subr.mxu0 %v435
    %1344 = vmatpush1.msra.mxu0 %v434
    %1345 = vmatprep.subr.mxu0 0.0
    %1346 = vmatpush1.msra.mxu0 0.0
    %1347 = vmatprep.subr.mxu0 0.0
    %1348 = vmatpush1.msra.mxu0 0.0
    %1349 = vmatprep.subr.mxu0 0.0
    %1350 = vmatpush1.msra.mxu0 0.0
    %1351 = vmatprep.subr.mxu0 0.0
    %1352 = vmatpush1.msra.mxu0 0.0
    %1353 = vmatprep.subr.mxu0 0.0
    %1354 = vmatpush1.msra.mxu0 0.0
    %1355 = vmatprep.subr.mxu0 0.0
    %1356 = vmatpush1.msra.mxu0 0.0
    %1357 = vmatprep.subr.mxu0 0.0
    %1358 = vmatpush1.msra.mxu0 0.0
    %1359 = vmatprep.subr.mxu0 0.0
    %1360 = vmatpush1.msra.mxu0 0.0
    %1361 = vmatprep.subr.mxu0 0.0
    %1362 = vmatpush1.msra.mxu0 0.0
    %1363 = vmatprep.subr.mxu0 0.0
    %1364 = vmatpush1.msra.mxu0 0.0
    %1365 = vmatprep.subr.mxu0 0.0
    %1366 = vmatpush1.msra.mxu0 0.0
    %1367 = vmatprep.subr.mxu0 0.0
    %1368 = vmatpush1.msra.mxu0 0.0
    %1369 = vmatprep.subr.mxu0 0.0
    %1370 = vmatpush1.msra.mxu0 0.0
    %1371 = vmatprep.subr.mxu0 0.0
    %1372 = vmatpush1.msra.mxu0 0.0
    %1373 = vmatprep.subr.mxu0 0.0
    %1374 = vmatpush1.msra.mxu0 0.0
    %1375 = vmatprep.subr.mxu0 0.0
    %1376 = vmatpush1.msra.mxu0 0.0
    %1377 = vmatprep.mubr.f32.mxu0 0.0
    %1378 = vmatmul.mubr.f32.gmra.mrb[0].mxu0 %v1308
    %v1379 = vpop.f32.mrb[0].mxu0
    %v1380 = vadd.f32 0.0, %v1379
    %v1381 = vpop.f32.mrb[0].mxu0
    %v1382 = vadd.f32 0.0, %v1381
    %1383 = vdwg.mxu0
    %1384 = vmatprep.subr.mxu0 0.0
    %1385 = vmatpush1.msra.mxu0 %v391
    %1386 = vmatprep.subr.mxu0 0.0
    %1387 = vmatpush1.msra.mxu0 %v394
    %1388 = vmatprep.subr.mxu0 0.0
    %1389 = vmatpush1.msra.mxu0 %v397
    %1390 = vmatprep.subr.mxu0 0.0
    %1391 = vmatpush1.msra.mxu0 %v400
    %1392 = vmatprep.subr.mxu0 0.0
    %1393 = vmatpush1.msra.mxu0 %v403
    %1394 = vmatprep.subr.mxu0 0.0
    %1395 = vmatpush1.msra.mxu0 %v406
    %1396 = vmatprep.subr.mxu0 0.0
    %1397 = vmatpush1.msra.mxu0 %v409
    %1398 = vmatprep.subr.mxu0 0.0
    %1399 = vmatpush1.msra.mxu0 %v412
    %1400 = vmatprep.subr.mxu0 0.0
    %1401 = vmatpush1.msra.mxu0 %v415
    %1402 = vmatprep.subr.mxu0 0.0
    %1403 = vmatpush1.msra.mxu0 %v418
    %1404 = vmatprep.subr.mxu0 0.0
    %1405 = vmatpush1.msra.mxu0 %v421
    %1406 = vmatprep.subr.mxu0 0.0
    %1407 = vmatpush1.msra.mxu0 %v424
    %1408 = vmatprep.subr.mxu0 0.0
    %1409 = vmatpush1.msra.mxu0 %v427
    %1410 = vmatprep.subr.mxu0 0.0
    %1411 = vmatpush1.msra.mxu0 %v430
    %1412 = vmatprep.subr.mxu0 0.0
    %1413 = vmatpush1.msra.mxu0 %v433
    %1414 = vmatprep.subr.mxu0 0.0
    %1415 = vmatpush1.msra.mxu0 %v436
    %1416 = vmatprep.subr.mxu0 0.0
    %1417 = vmatpush1.msra.mxu0 0.0
    %1418 = vmatprep.subr.mxu0 0.0
    %1419 = vmatpush1.msra.mxu0 0.0
    %1420 = vmatprep.subr.mxu0 0.0
    %1421 = vmatpush1.msra.mxu0 0.0
    %1422 = vmatprep.subr.mxu0 0.0
    %1423 = vmatpush1.msra.mxu0 0.0
    %1424 = vmatprep.subr.mxu0 0.0
    %1425 = vmatpush1.msra.mxu0 0.0
    %1426 = vmatprep.subr.mxu0 0.0
    %1427 = vmatpush1.msra.mxu0 0.0
    %1428 = vmatprep.subr.mxu0 0.0
    %1429 = vmatpush1.msra.mxu0 0.0
    %1430 = vmatprep.subr.mxu0 0.0
    %1431 = vmatpush1.msra.mxu0 0.0
    %1432 = vmatprep.subr.mxu0 0.0
    %1433 = vmatpush1.msra.mxu0 0.0
    %1434 = vmatprep.subr.mxu0 0.0
    %1435 = vmatpush1.msra.mxu0 0.0
    %1436 = vmatprep.subr.mxu0 0.0
    %1437 = vmatpush1.msra.mxu0 0.0
    %1438 = vmatprep.subr.mxu0 0.0
    %1439 = vmatpush1.msra.mxu0 0.0
    %1440 = vmatprep.subr.mxu0 0.0
    %1441 = vmatpush1.msra.mxu0 0.0
    %1442 = vmatprep.subr.mxu0 0.0
    %1443 = vmatpush1.msra.mxu0 0.0
    %1444 = vmatprep.subr.mxu0 0.0
    %1445 = vmatpush1.msra.mxu0 0.0
    %1446 = vmatprep.subr.mxu0 0.0
    %1447 = vmatpush1.msra.mxu0 0.0
    %1448 = vmatprep.mubr.f32.mxu0 0.0
    %1449 = vmatmul.mubr.f32.gmra.mrb[0].mxu0 %v1308
    %v1450 = vpop.f32.mrb[0].mxu0
    %v1451 = vadd.f32 0.0, %v1450
    %v1452 = vpop.f32.mrb[0].mxu0
    %1453 = vdwg.mxu0
    %v1454 = vadd.f32 %v1310, %v1380
    %v1455 = vxor.u32 %v1454, 2147483648
    %v1456 = vmul.f32 %v1455, 1.442695
    %v1457 = vpow.pop %v1456
    %v1458 = vadd.f32 %v1457, 1.0
    %v1459 = vrcp.pop %v1458
    %v1460 = vmul.f32 1.0, %v1459
    %v1461 = vadd.f32 %v1311, %v1382
    %v1462 = vxor.u32 %v1461, 2147483648
    %v1463 = vmul.f32 %v1462, 1.442695
    %v1464 = vpow.pop %v1463
    %v1465 = vadd.f32 %v1464, 1.0
    %v1466 = vrcp.pop %v1465
    %v1467 = vmul.f32 1.0, %v1466
    %v1468 = vadd.f32 %v1451, %v442
    %v1469 = vmul.f32 %v1460, %v1468
    %v1470 = vadd.f32 %v1312, %v1469
    %v1471 = vtanh.pop %v1470
    %v1472 = vsub.f32 %v1308, %v1471
    %v1473 = vmul.f32 %v1467, %v1472
    %v1474 = vadd.f32 %v1471, %v1473
    %vm1475 = vcmp.gt.s32.totalorder %v444, 5
    %v1476 = vsel %vm1475, 1, 0
    %1477 = vset.pattern.permute.xlu0 0
    %1478 = vperm.xlu0 %1477, %v1476
    %v1479 = vpop.permute.xlu0 %1478
    %vm1480 = vcmp.eq.s32.totalorder %v1479, 1
    %v1481 = vsel %vm1480, %v1474, %v1308
    %s1482 = scalar_lea.vmem [#allocation2], 144
    %v1483 = vld [vmem:[%s1482] sm:$0xff]
    %v1484 = vld [vmem:[%s1482 + $0x8] sm:$0xff]
    %v1485 = vld [vmem:[%s1482 + $0x10] sm:$0xff]
    %1486 = vmatprep.subr.mxu0 %v390
    %1487 = vmatpush1.msra.mxu0 %v389
    %1488 = vmatprep.subr.mxu0 %v393
    %1489 = vmatpush1.msra.mxu0 %v392
    %1490 = vmatprep.subr.mxu0 %v396
    %1491 = vmatpush1.msra.mxu0 %v395
    %1492 = vmatprep.subr.mxu0 %v399
    %1493 = vmatpush1.msra.mxu0 %v398
    %1494 = vmatprep.subr.mxu0 %v402
    %1495 = vmatpush1.msra.mxu0 %v401
    %1496 = vmatprep.subr.mxu0 %v405
    %1497 = vmatpush1.msra.mxu0 %v404
    %1498 = vmatprep.subr.mxu0 %v408
    %1499 = vmatpush1.msra.mxu0 %v407
    %1500 = vmatprep.subr.mxu0 %v411
    %1501 = vmatpush1.msra.mxu0 %v410
    %1502 = vmatprep.subr.mxu0 %v414
    %1503 = vmatpush1.msra.mxu0 %v413
    %1504 = vmatprep.subr.mxu0 %v417
    %1505 = vmatpush1.msra.mxu0 %v416
    %1506 = vmatprep.subr.mxu0 %v420
    %1507 = vmatpush1.msra.mxu0 %v419
    %1508 = vmatprep.subr.mxu0 %v423
    %1509 = vmatpush1.msra.mxu0 %v422
    %1510 = vmatprep.subr.mxu0 %v426
    %1511 = vmatpush1.msra.mxu0 %v425
    %1512 = vmatprep.subr.mxu0 %v429
    %1513 = vmatpush1.msra.mxu0 %v428
    %1514 = vmatprep.subr.mxu0 %v432
    %1515 = vmatpush1.msra.mxu0 %v431
    %1516 = vmatprep.subr.mxu0 %v435
    %1517 = vmatpush1.msra.mxu0 %v434
    %1518 = vmatprep.subr.mxu0 0.0
    %1519 = vmatpush1.msra.mxu0 0.0
    %1520 = vmatprep.subr.mxu0 0.0
    %1521 = vmatpush1.msra.mxu0 0.0
    %1522 = vmatprep.subr.mxu0 0.0
    %1523 = vmatpush1.msra.mxu0 0.0
    %1524 = vmatprep.subr.mxu0 0.0
    %1525 = vmatpush1.msra.mxu0 0.0
    %1526 = vmatprep.subr.mxu0 0.0
    %1527 = vmatpush1.msra.mxu0 0.0
    %1528 = vmatprep.subr.mxu0 0.0
    %1529 = vmatpush1.msra.mxu0 0.0
    %1530 = vmatprep.subr.mxu0 0.0
    %1531 = vmatpush1.msra.mxu0 0.0
    %1532 = vmatprep.subr.mxu0 0.0
    %1533 = vmatpush1.msra.mxu0 0.0
    %1534 = vmatprep.subr.mxu0 0.0
    %1535 = vmatpush1.msra.mxu0 0.0
    %1536 = vmatprep.subr.mxu0 0.0
    %1537 = vmatpush1.msra.mxu0 0.0
    %1538 = vmatprep.subr.mxu0 0.0
    %1539 = vmatpush1.msra.mxu0 0.0
    %1540 = vmatprep.subr.mxu0 0.0
    %1541 = vmatpush1.msra.mxu0 0.0
    %1542 = vmatprep.subr.mxu0 0.0
    %1543 = vmatpush1.msra.mxu0 0.0
    %1544 = vmatprep.subr.mxu0 0.0
    %1545 = vmatpush1.msra.mxu0 0.0
    %1546 = vmatprep.subr.mxu0 0.0
    %1547 = vmatpush1.msra.mxu0 0.0
    %1548 = vmatprep.subr.mxu0 0.0
    %1549 = vmatpush1.msra.mxu0 0.0
    %1550 = vmatprep.mubr.f32.mxu0 0.0
    %1551 = vmatmul.mubr.f32.gmra.mrb[0].mxu0 %v1481
    %v1552 = vpop.f32.mrb[0].mxu0
    %v1553 = vadd.f32 0.0, %v1552
    %v1554 = vpop.f32.mrb[0].mxu0
    %v1555 = vadd.f32 0.0, %v1554
    %1556 = vdwg.mxu0
    %1557 = vmatprep.subr.mxu0 0.0
    %1558 = vmatpush1.msra.mxu0 %v391
    %1559 = vmatprep.subr.mxu0 0.0
    %1560 = vmatpush1.msra.mxu0 %v394
    %1561 = vmatprep.subr.mxu0 0.0
    %1562 = vmatpush1.msra.mxu0 %v397
    %1563 = vmatprep.subr.mxu0 0.0
    %1564 = vmatpush1.msra.mxu0 %v400
    %1565 = vmatprep.subr.mxu0 0.0
    %1566 = vmatpush1.msra.mxu0 %v403
    %1567 = vmatprep.subr.mxu0 0.0
    %1568 = vmatpush1.msra.mxu0 %v406
    %1569 = vmatprep.subr.mxu0 0.0
    %1570 = vmatpush1.msra.mxu0 %v409
    %1571 = vmatprep.subr.mxu0 0.0
    %1572 = vmatpush1.msra.mxu0 %v412
    %1573 = vmatprep.subr.mxu0 0.0
    %1574 = vmatpush1.msra.mxu0 %v415
    %1575 = vmatprep.subr.mxu0 0.0
    %1576 = vmatpush1.msra.mxu0 %v418
    %1577 = vmatprep.subr.mxu0 0.0
    %1578 = vmatpush1.msra.mxu0 %v421
    %1579 = vmatprep.subr.mxu0 0.0
    %1580 = vmatpush1.msra.mxu0 %v424
    %1581 = vmatprep.subr.mxu0 0.0
    %1582 = vmatpush1.msra.mxu0 %v427
    %1583 = vmatprep.subr.mxu0 0.0
    %1584 = vmatpush1.msra.mxu0 %v430
    %1585 = vmatprep.subr.mxu0 0.0
    %1586 = vmatpush1.msra.mxu0 %v433
    %1587 = vmatprep.subr.mxu0 0.0
    %1588 = vmatpush1.msra.mxu0 %v436
    %1589 = vmatprep.subr.mxu0 0.0
    %1590 = vmatpush1.msra.mxu0 0.0
    %1591 = vmatprep.subr.mxu0 0.0
    %1592 = vmatpush1.msra.mxu0 0.0
    %1593 = vmatprep.subr.mxu0 0.0
    %1594 = vmatpush1.msra.mxu0 0.0
    %1595 = vmatprep.subr.mxu0 0.0
    %1596 = vmatpush1.msra.mxu0 0.0
    %1597 = vmatprep.subr.mxu0 0.0
    %1598 = vmatpush1.msra.mxu0 0.0
    %1599 = vmatprep.subr.mxu0 0.0
    %1600 = vmatpush1.msra.mxu0 0.0
    %1601 = vmatprep.subr.mxu0 0.0
    %1602 = vmatpush1.msra.mxu0 0.0
    %1603 = vmatprep.subr.mxu0 0.0
    %1604 = vmatpush1.msra.mxu0 0.0
    %1605 = vmatprep.subr.mxu0 0.0
    %1606 = vmatpush1.msra.mxu0 0.0
    %1607 = vmatprep.subr.mxu0 0.0
    %1608 = vmatpush1.msra.mxu0 0.0
    %1609 = vmatprep.subr.mxu0 0.0
    %1610 = vmatpush1.msra.mxu0 0.0
    %1611 = vmatprep.subr.mxu0 0.0
    %1612 = vmatpush1.msra.mxu0 0.0
    %1613 = vmatprep.subr.mxu0 0.0
    %1614 = vmatpush1.msra.mxu0 0.0
    %1615 = vmatprep.subr.mxu0 0.0
    %1616 = vmatpush1.msra.mxu0 0.0
    %1617 = vmatprep.subr.mxu0 0.0
    %1618 = vmatpush1.msra.mxu0 0.0
    %1619 = vmatprep.subr.mxu0 0.0
    %1620 = vmatpush1.msra.mxu0 0.0
    %1621 = vmatprep.mubr.f32.mxu0 0.0
    %1622 = vmatmul.mubr.f32.gmra.mrb[0].mxu0 %v1481
    %v1623 = vpop.f32.mrb[0].mxu0
    %v1624 = vadd.f32 0.0, %v1623
    %v1625 = vpop.f32.mrb[0].mxu0
    %1626 = vdwg.mxu0
    %v1627 = vadd.f32 %v1483, %v1553
    %v1628 = vxor.u32 %v1627, 2147483648
    %v1629 = vmul.f32 %v1628, 1.442695
    %v1630 = vpow.pop %v1629
    %v1631 = vadd.f32 %v1630, 1.0
    %v1632 = vrcp.pop %v1631
    %v1633 = vmul.f32 1.0, %v1632
    %v1634 = vadd.f32 %v1484, %v1555
    %v1635 = vxor.u32 %v1634, 2147483648
    %v1636 = vmul.f32 %v1635, 1.442695
    %v1637 = vpow.pop %v1636
    %v1638 = vadd.f32 %v1637, 1.0
    %v1639 = vrcp.pop %v1638
    %v1640 = vmul.f32 1.0, %v1639
    %v1641 = vadd.f32 %v1624, %v442
    %v1642 = vmul.f32 %v1633, %v1641
    %v1643 = vadd.f32 %v1485, %v1642
    %v1644 = vtanh.pop %v1643
    %v1645 = vsub.f32 %v1481, %v1644
    %v1646 = vmul.f32 %v1640, %v1645
    %v1647 = vadd.f32 %v1644, %v1646
    %vm1648 = vcmp.gt.s32.totalorder %v444, 6
    %v1649 = vsel %vm1648, 1, 0
    %1650 = vset.pattern.permute.xlu0 0
    %1651 = vperm.xlu0 %1650, %v1649
    %v1652 = vpop.permute.xlu0 %1651
    %vm1653 = vcmp.eq.s32.totalorder %v1652, 1
    %v1654 = vsel %vm1653, %v1647, %v1481
    %s1655 = scalar_lea.vmem [#allocation2], 168
    %v1656 = vld [vmem:[%s1655] sm:$0xff]
    %v1657 = vld [vmem:[%s1655 + $0x8] sm:$0xff]
    %v1658 = vld [vmem:[%s1655 + $0x10] sm:$0xff]
    %1659 = vmatprep.subr.mxu0 %v390
    %1660 = vmatpush1.msra.mxu0 %v389
    %1661 = vmatprep.subr.mxu0 %v393
    %1662 = vmatpush1.msra.mxu0 %v392
    %1663 = vmatprep.subr.mxu0 %v396
    %1664 = vmatpush1.msra.mxu0 %v395
    %1665 = vmatprep.subr.mxu0 %v399
    %1666 = vmatpush1.msra.mxu0 %v398
    %1667 = vmatprep.subr.mxu0 %v402
    %1668 = vmatpush1.msra.mxu0 %v401
    %1669 = vmatprep.subr.mxu0 %v405
    %1670 = vmatpush1.msra.mxu0 %v404
    %1671 = vmatprep.subr.mxu0 %v408
    %1672 = vmatpush1.msra.mxu0 %v407
    %1673 = vmatprep.subr.mxu0 %v411
    %1674 = vmatpush1.msra.mxu0 %v410
    %1675 = vmatprep.subr.mxu0 %v414
    %1676 = vmatpush1.msra.mxu0 %v413
    %1677 = vmatprep.subr.mxu0 %v417
    %1678 = vmatpush1.msra.mxu0 %v416
    %1679 = vmatprep.subr.mxu0 %v420
    %1680 = vmatpush1.msra.mxu0 %v419
    %1681 = vmatprep.subr.mxu0 %v423
    %1682 = vmatpush1.msra.mxu0 %v422
    %1683 = vmatprep.subr.mxu0 %v426
    %1684 = vmatpush1.msra.mxu0 %v425
    %1685 = vmatprep.subr.mxu0 %v429
    %1686 = vmatpush1.msra.mxu0 %v428
    %1687 = vmatprep.subr.mxu0 %v432
    %1688 = vmatpush1.msra.mxu0 %v431
    %1689 = vmatprep.subr.mxu0 %v435
    %1690 = vmatpush1.msra.mxu0 %v434
    %1691 = vmatprep.subr.mxu0 0.0
    %1692 = vmatpush1.msra.mxu0 0.0
    %1693 = vmatprep.subr.mxu0 0.0
    %1694 = vmatpush1.msra.mxu0 0.0
    %1695 = vmatprep.subr.mxu0 0.0
    %1696 = vmatpush1.msra.mxu0 0.0
    %1697 = vmatprep.subr.mxu0 0.0
    %1698 = vmatpush1.msra.mxu0 0.0
    %1699 = vmatprep.subr.mxu0 0.0
    %1700 = vmatpush1.msra.mxu0 0.0
    %1701 = vmatprep.subr.mxu0 0.0
    %1702 = vmatpush1.msra.mxu0 0.0
    %1703 = vmatprep.subr.mxu0 0.0
    %1704 = vmatpush1.msra.mxu0 0.0
    %1705 = vmatprep.subr.mxu0 0.0
    %1706 = vmatpush1.msra.mxu0 0.0
    %1707 = vmatprep.subr.mxu0 0.0
    %1708 = vmatpush1.msra.mxu0 0.0
    %1709 = vmatprep.subr.mxu0 0.0
    %1710 = vmatpush1.msra.mxu0 0.0
    %1711 = vmatprep.subr.mxu0 0.0
    %1712 = vmatpush1.msra.mxu0 0.0
    %1713 = vmatprep.subr.mxu0 0.0
    %1714 = vmatpush1.msra.mxu0 0.0
    %1715 = vmatprep.subr.mxu0 0.0
    %1716 = vmatpush1.msra.mxu0 0.0
    %1717 = vmatprep.subr.mxu0 0.0
    %1718 = vmatpush1.msra.mxu0 0.0
    %1719 = vmatprep.subr.mxu0 0.0
    %1720 = vmatpush1.msra.mxu0 0.0
    %1721 = vmatprep.subr.mxu0 0.0
    %1722 = vmatpush1.msra.mxu0 0.0
    %1723 = vmatprep.mubr.f32.mxu0 0.0
    %1724 = vmatmul.mubr.f32.gmra.mrb[0].mxu0 %v1654
    %v1725 = vpop.f32.mrb[0].mxu0
    %v1726 = vadd.f32 0.0, %v1725
    %v1727 = vpop.f32.mrb[0].mxu0
    %v1728 = vadd.f32 0.0, %v1727
    %1729 = vdwg.mxu0
    %1730 = vmatprep.subr.mxu0 0.0
    %1731 = vmatpush1.msra.mxu0 %v391
    %1732 = vmatprep.subr.mxu0 0.0
    %1733 = vmatpush1.msra.mxu0 %v394
    %1734 = vmatprep.subr.mxu0 0.0
    %1735 = vmatpush1.msra.mxu0 %v397
    %1736 = vmatprep.subr.mxu0 0.0
    %1737 = vmatpush1.msra.mxu0 %v400
    %1738 = vmatprep.subr.mxu0 0.0
    %1739 = vmatpush1.msra.mxu0 %v403
    %1740 = vmatprep.subr.mxu0 0.0
    %1741 = vmatpush1.msra.mxu0 %v406
    %1742 = vmatprep.subr.mxu0 0.0
    %1743 = vmatpush1.msra.mxu0 %v409
    %1744 = vmatprep.subr.mxu0 0.0
    %1745 = vmatpush1.msra.mxu0 %v412
    %1746 = vmatprep.subr.mxu0 0.0
    %1747 = vmatpush1.msra.mxu0 %v415
    %1748 = vmatprep.subr.mxu0 0.0
    %1749 = vmatpush1.msra.mxu0 %v418
    %1750 = vmatprep.subr.mxu0 0.0
    %1751 = vmatpush1.msra.mxu0 %v421
    %1752 = vmatprep.subr.mxu0 0.0
    %1753 = vmatpush1.msra.mxu0 %v424
    %1754 = vmatprep.subr.mxu0 0.0
    %1755 = vmatpush1.msra.mxu0 %v427
    %1756 = vmatprep.subr.mxu0 0.0
    %1757 = vmatpush1.msra.mxu0 %v430
    %1758 = vmatprep.subr.mxu0 0.0
    %1759 = vmatpush1.msra.mxu0 %v433
    %1760 = vmatprep.subr.mxu0 0.0
    %1761 = vmatpush1.msra.mxu0 %v436
    %1762 = vmatprep.subr.mxu0 0.0
    %1763 = vmatpush1.msra.mxu0 0.0
    %1764 = vmatprep.subr.mxu0 0.0
    %1765 = vmatpush1.msra.mxu0 0.0
    %1766 = vmatprep.subr.mxu0 0.0
    %1767 = vmatpush1.msra.mxu0 0.0
    %1768 = vmatprep.subr.mxu0 0.0
    %1769 = vmatpush1.msra.mxu0 0.0
    %1770 = vmatprep.subr.mxu0 0.0
    %1771 = vmatpush1.msra.mxu0 0.0
    %1772 = vmatprep.subr.mxu0 0.0
    %1773 = vmatpush1.msra.mxu0 0.0
    %1774 = vmatprep.subr.mxu0 0.0
    %1775 = vmatpush1.msra.mxu0 0.0
    %1776 = vmatprep.subr.mxu0 0.0
    %1777 = vmatpush1.msra.mxu0 0.0
    %1778 = vmatprep.subr.mxu0 0.0
    %1779 = vmatpush1.msra.mxu0 0.0
    %1780 = vmatprep.subr.mxu0 0.0
    %1781 = vmatpush1.msra.mxu0 0.0
    %1782 = vmatprep.subr.mxu0 0.0
    %1783 = vmatpush1.msra.mxu0 0.0
    %1784 = vmatprep.subr.mxu0 0.0
    %1785 = vmatpush1.msra.mxu0 0.0
    %1786 = vmatprep.subr.mxu0 0.0
    %1787 = vmatpush1.msra.mxu0 0.0
    %1788 = vmatprep.subr.mxu0 0.0
    %1789 = vmatpush1.msra.mxu0 0.0
    %1790 = vmatprep.subr.mxu0 0.0
    %1791 = vmatpush1.msra.mxu0 0.0
    %1792 = vmatprep.subr.mxu0 0.0
    %1793 = vmatpush1.msra.mxu0 0.0
    %1794 = vmatprep.mubr.f32.mxu0 0.0
    %1795 = vmatmul.mubr.f32.gmra.mrb[0].mxu0 %v1654
    %v1796 = vpop.f32.mrb[0].mxu0
    %v1797 = vadd.f32 0.0, %v1796
    %v1798 = vpop.f32.mrb[0].mxu0
    %1799 = vdwg.mxu0
    %v1800 = vadd.f32 %v1656, %v1726
    %v1801 = vxor.u32 %v1800, 2147483648
    %v1802 = vmul.f32 %v1801, 1.442695
    %v1803 = vpow.pop %v1802
    %v1804 = vadd.f32 %v1803, 1.0
    %v1805 = vrcp.pop %v1804
    %v1806 = vmul.f32 1.0, %v1805
    %v1807 = vadd.f32 %v1657, %v1728
    %v1808 = vxor.u32 %v1807, 2147483648
    %v1809 = vmul.f32 %v1808, 1.442695
    %v1810 = vpow.pop %v1809
    %v1811 = vadd.f32 %v1810, 1.0
    %v1812 = vrcp.pop %v1811
    %v1813 = vmul.f32 1.0, %v1812
    %v1814 = vadd.f32 %v1797, %v442
    %v1815 = vmul.f32 %v1806, %v1814
    %v1816 = vadd.f32 %v1658, %v1815
    %v1817 = vtanh.pop %v1816
    %v1818 = vsub.f32 %v1654, %v1817
    %v1819 = vmul.f32 %v1813, %v1818
    %v1820 = vadd.f32 %v1817, %v1819
    %vm1821 = vcmp.gt.s32.totalorder %v444, 7
    %v1822 = vsel %vm1821, 1, 0
    %1823 = vset.pattern.permute.xlu0 0
    %1824 = vperm.xlu0 %1823, %v1822
    %v1825 = vpop.permute.xlu0 %1824
    %vm1826 = vcmp.eq.s32.totalorder %v1825, 1
    %v1827 = vsel %vm1826, %v1820, %v1654
    %1828 = vst [vmem:[#allocation9] sm:$0xff] %v1827
    %v1829 = vld [vmem:[#allocation6] sm:$0xff]
    %v1830 = vld [vmem:[#allocation6 + $0x8] sm:$0xff]
    %v1831 = vld [vmem:[#allocation6 + $0x10] sm:$0xff]
    %v1832 = vld [vmem:[#allocation6 + $0x18] sm:$0xff]
    %v1833 = vld [vmem:[#allocation6 + $0x20] sm:$0xff]
    %v1834 = vld [vmem:[#allocation6 + $0x28] sm:$0xff]
    %v1835 = vld [vmem:[#allocation6 + $0x30] sm:$0xff]
    %v1836 = vld [vmem:[#allocation6 + $0x38] sm:$0xff]
    %v1837 = vld [vmem:[#allocation6 + $0x40] sm:$0xff]
    %v1838 = vld [vmem:[#allocation6 + $0x48] sm:$0xff]
    %v1839 = vld [vmem:[#allocation6 + $0x50] sm:$0xff]
    %v1840 = vld [vmem:[#allocation6 + $0x58] sm:$0xff]
    %v1841 = vld [vmem:[#allocation6 + $0x60] sm:$0xff]
    %v1842 = vld [vmem:[#allocation6 + $0x68] sm:$0xff]
    %v1843 = vld [vmem:[#allocation6 + $0x70] sm:$0xff]
    %v1844 = vld [vmem:[#allocation6 + $0x78] sm:$0xff]
    %v1845 = vld [vmem:[%s7] sm:$0x1]
    %v1847 = vlaneseq
    %v1848 = vshrl.u32 %v1847, 7
    %v1849 = vsub.s32 0, %v1848
    %v1850 = vrot.slane %v1845, %v1849
    %1852 = vmatprep.subr.mxu0 0.0
    %1853 = vmatpush1.msra.mxu0 %v1829
    %1854 = vmatprep.subr.mxu0 0.0
    %1855 = vmatpush1.msra.mxu0 %v1830
    %1856 = vmatprep.subr.mxu0 0.0
    %1857 = vmatpush1.msra.mxu0 %v1831
    %1858 = vmatprep.subr.mxu0 0.0
    %1859 = vmatpush1.msra.mxu0 %v1832
    %1860 = vmatprep.subr.mxu0 0.0
    %1861 = vmatpush1.msra.mxu0 %v1833
    %1862 = vmatprep.subr.mxu0 0.0
    %1863 = vmatpush1.msra.mxu0 %v1834
    %1864 = vmatprep.subr.mxu0 0.0
    %1865 = vmatpush1.msra.mxu0 %v1835
    %1866 = vmatprep.subr.mxu0 0.0
    %1867 = vmatpush1.msra.mxu0 %v1836
    %1868 = vmatprep.subr.mxu0 0.0
    %1869 = vmatpush1.msra.mxu0 %v1837
    %1870 = vmatprep.subr.mxu0 0.0
    %1871 = vmatpush1.msra.mxu0 %v1838
    %1872 = vmatprep.subr.mxu0 0.0
    %1873 = vmatpush1.msra.mxu0 %v1839
    %1874 = vmatprep.subr.mxu0 0.0
    %1875 = vmatpush1.msra.mxu0 %v1840
    %1876 = vmatprep.subr.mxu0 0.0
    %1877 = vmatpush1.msra.mxu0 %v1841
    %1878 = vmatprep.subr.mxu0 0.0
    %1879 = vmatpush1.msra.mxu0 %v1842
    %1880 = vmatprep.subr.mxu0 0.0
    %1881 = vmatpush1.msra.mxu0 %v1843
    %1882 = vmatprep.subr.mxu0 0.0
    %1883 = vmatpush1.msra.mxu0 %v1844
    %1884 = vmatprep.subr.mxu0 0.0
    %1885 = vmatpush1.msra.mxu0 0.0
    %1886 = vmatprep.subr.mxu0 0.0
    %1887 = vmatpush1.msra.mxu0 0.0
    %1888 = vmatprep.subr.mxu0 0.0
    %1889 = vmatpush1.msra.mxu0 0.0
    %1890 = vmatprep.subr.mxu0 0.0
    %1891 = vmatpush1.msra.mxu0 0.0
    %1892 = vmatprep.subr.mxu0 0.0
    %1893 = vmatpush1.msra.mxu0 0.0
    %1894 = vmatprep.subr.mxu0 0.0
    %1895 = vmatpush1.msra.mxu0 0.0
    %1896 = vmatprep.subr.mxu0 0.0
    %1897 = vmatpush1.msra.mxu0 0.0
    %1898 = vmatprep.subr.mxu0 0.0
    %1899 = vmatpush1.msra.mxu0 0.0
    %1900 = vmatprep.subr.mxu0 0.0
    %1901 = vmatpush1.msra.mxu0 0.0
    %1902 = vmatprep.subr.mxu0 0.0
    %1903 = vmatpush1.msra.mxu0 0.0
    %1904 = vmatprep.subr.mxu0 0.0
    %1905 = vmatpush1.msra.mxu0 0.0
    %1906 = vmatprep.subr.mxu0 0.0
    %1907 = vmatpush1.msra.mxu0 0.0
    %1908 = vmatprep.subr.mxu0 0.0
    %1909 = vmatpush1.msra.mxu0 0.0
    %1910 = vmatprep.subr.mxu0 0.0
    %1911 = vmatpush1.msra.mxu0 0.0
    %1912 = vmatprep.subr.mxu0 0.0
    %1913 = vmatpush1.msra.mxu0 0.0
    %1914 = vmatprep.subr.mxu0 0.0
    %1915 = vmatpush1.msra.mxu0 0.0
    %1916 = vmatprep.mubr.f32.mxu0 0.0
    %1917 = vmatmul.mubr.f32.gmra.mrb[0].mxu0 %v1827
    %v1918 = vpop.f32.mrb[0].mxu0
    %v1919 = vadd.f32 %v1850, %v1918
    %v1920 = vpop.f32.mrb[0].mxu0
    %1921 = vdwg.mxu0
    %1922 = vst [vmem:[#allocation8] sm:$0xff] %v1919
    // Predicated region
    $region42: #{tpu_custom_call.1} parent=1 // pred_check
      _
    $region43: #{tpu_custom_call.1} parent=1 // pred_check_branch
      %1924 = sbr.rel (0) target = $region45
    $region44: #{tpu_custom_call.1} parent=1 // pred_region
      %s1926 = ssub.s32 128, 128
      %1927 = vsyncadd [#allocation5], %s1926
      %s1929 = sshll.u32 [#allocation8], 4
      %s1930 = int_to_ptr.vmem [resolvable:$true] %s1929
      %1932 = dma.vmem_to_hbm [thread:$0]  %s1930, 128, %s8, [#allocation5]
    $region45: #{tpu_custom_call.1} parent=1 // pred_fallthru
      _
    // Predicated region
    $region46: #{tpu_custom_call.1} parent=1 // pred_check
      _
    $region47: #{tpu_custom_call.1} parent=1 // pred_check_branch
      %1934 = sbr.rel (0) target = $region49
    $region48: #{tpu_custom_call.1} parent=1 // pred_region
      %s1936 = ssub.s32 128, 128
      %1937 = vsyncadd [#allocation10], %s1936
      %s1939 = sshll.u32 [#allocation9], 4
      %s1940 = int_to_ptr.vmem [resolvable:$true] %s1939
      %1942 = dma.vmem_to_hbm [thread:$0]  %s1940, 128, %s9, [#allocation10]
    $region49: #{tpu_custom_call.1} parent=1 // pred_fallthru
      _
    // Predicated region
    $region50: #{tpu_custom_call.1} parent=1 // pred_check
      _
    $region51: #{tpu_custom_call.1} parent=1 // pred_check_branch
      %1944 = sbr.rel (0) target = $region53
    $region52: #{tpu_custom_call.1} parent=1 // pred_region
      %1945 = dma.done [#allocation5], 128
    $region53: #{tpu_custom_call.1} parent=1 // pred_fallthru
      _
    // Predicated region
    $region54: #{tpu_custom_call.1} parent=1 // pred_check
      _
    $region55: #{tpu_custom_call.1} parent=1 // pred_check_branch
      %1947 = sbr.rel (0) target = $region57
    $region56: #{tpu_custom_call.1} parent=1 // pred_region
      %1948 = dma.done [#allocation10], 128
    $region57: #{tpu_custom_call.1} parent=1 // pred_fallthru
      _
    %1949 = vsyncpa [#allocation4], 1
    %1950 = vsyncpa [#allocation7], 1
    %1951 = vsyncpa [#allocation5], 1
    %1952 = vsyncpa [#allocation10], 1

</llo_original>
